<compile_context>
chip_gen: v5e
topology: v5e:2x2
jax: 0.10.0
libtpu: 0.0.40
codegen_flags: <defaults>
</compile_context>

<pallas_src>
import math

import jax
import jax.numpy as jnp
from jax.experimental import pallas as pl
from jax.experimental.pallas import tpu as pltpu


_LN_EPS = 1e-5


def _round_up(x: int, m: int) -> int:
    return (x + m - 1) // m * m


def _make_decoder_kernel(num_hidden, hidden_true_dims, compute_dtype):
    """Fused kernel: mean branch then theta branch, eager output stores.

    Ref order:
      x_ref,
      per branch (mean then theta):
        [w_l, pp_l] * num_hidden,   # pp_l = (3, dim) pack of [bias; gamma; beta]
        w_last, b_last,             # final Linear block (gene-tiled)
      mean_out_ref, theta_out_ref
    """
    n_per_branch = 2 * num_hidden + 2

    def ln_relu(a, pp_ref, d_true):
        # Two-pass LayerNorm over the TRUE width (padded lanes are exactly 0
        # pre-LN and stay 0 post-LN because gamma/beta padding is 0).
        gamma = pp_ref[1:2, :]
        beta = pp_ref[2:3, :]
        d_pad = a.shape[-1]
        inv_d = 1.0 / float(d_true)
        mu = jnp.sum(a, axis=-1, keepdims=True) * inv_d
        c = a - mu
        if d_pad != d_true:
            lane = jax.lax.broadcasted_iota(jnp.int32, a.shape, 1)
            c = jnp.where(lane < d_true, c, 0.0)
        var = jnp.sum(c * c, axis=-1, keepdims=True) * inv_d
        out = c * jax.lax.rsqrt(var + _LN_EPS) * gamma + beta
        return jnp.maximum(out, 0.0)

    def kernel(*refs):
        x = refs[0][...].astype(compute_dtype)
        mean_ref = refs[-2]
        theta_ref = refs[-1]
        for branch in range(2):
            base = 1 + branch * n_per_branch
            h = x
            for l in range(num_hidden):
                w_ref = refs[base + 2 * l]
                pp_ref = refs[base + 2 * l + 1]
                a = jnp.dot(h, w_ref[...], preferred_element_type=jnp.float32)
                a = a + pp_ref[0:1, :]
                a = ln_relu(a, pp_ref, hidden_true_dims[l])
                h = a.astype(compute_dtype)
            w_last = refs[base + 2 * num_hidden][...]
            b_last = refs[base + 2 * num_hidden + 1][...]
            y = jnp.dot(h, w_last, preferred_element_type=jnp.float32) + b_last
            if branch == 0:
                # Softplus (PyTorch default beta=1, threshold=20).
                sp = jnp.where(y > 20.0, y,
                               jnp.log1p(jnp.exp(jnp.minimum(y, 20.0))))
                mean_ref[...] = sp.astype(mean_ref.dtype)
            else:
                # exp(softplus(y)) == 1 + exp(y) (f32-exact under the threshold).
                theta_ref[...] = (1.0 + jnp.exp(y)).astype(theta_ref.dtype)

    return kernel


def _prepare_branch(layer_params, last_params, n_genes_pad, compute_dtype):
    """Pad hidden widths to multiples of 128, pack bias/gamma/beta, cast weights."""
    flat = []
    true_dims = []
    pad_rows = 0  # zero rows to append to the NEXT layer's weight
    for (w, b, g, bt) in layer_params:
        d_out = w.shape[1]
        p_out = _round_up(d_out, 128)
        w = jnp.pad(w, ((0, pad_rows), (0, p_out - d_out))).astype(compute_dtype)
        pp = jnp.pad(jnp.concatenate([b, g, bt], axis=0),
                     ((0, 0), (0, p_out - d_out)))               # (3, p_out) f32
        flat += [w, pp]
        true_dims.append(d_out)
        pad_rows = p_out - d_out
    w_last, b_last = last_params
    d_out = w_last.shape[1]
    w_last = jnp.pad(w_last, ((0, pad_rows),
                              (0, n_genes_pad - d_out))).astype(compute_dtype)
    b_last = jnp.pad(b_last, ((0, 0), (0, n_genes_pad - d_out)))
    flat += [w_last, b_last]
    return flat, true_dims


def decoder_forward(z, memberships, dec_params, theta_params, n_genes, *,
                    tile_b=None, tile_n=1024, compute_dtype=jnp.bfloat16):
    B = z.shape[0]
    num_hidden = len(dec_params[0])

    # ---- Batch tiling (sublane-aligned, allow up to 256). ----
    if tile_b is None:
        tile_b = min(256, _round_up(B, 8))
    tile_b = _round_up(tile_b, 8)
    pB = _round_up(B, tile_b)

    # ---- Gene (output-lane) tiling: lane-dense, grid divides evenly. ----
    tile_n = max(128, _round_up(min(tile_n, _round_up(n_genes, 128)), 128))
    n_genes_pad = _round_up(n_genes, tile_n)

    # ---- Single fused first-layer input: concat([z, memberships]) (tiny op). ----
    x = jnp.concatenate([z.astype(jnp.float32),
                         memberships.astype(jnp.float32)], axis=1)
    if pB != B:
        x = jnp.pad(x, ((0, pB - B), (0, 0)))
    n_in = x.shape[1]

    dec_flat, dec_dims = _prepare_branch(dec_params[0], dec_params[1],
                                         n_genes_pad, compute_dtype)
    th_flat, th_dims = _prepare_branch(theta_params[0], theta_params[1],
                                       n_genes_pad, compute_dtype)
    assert dec_dims == th_dims
    params = dec_flat + th_flat

    grid = (pB // tile_b, n_genes_pad // tile_n)
    out_spec = pl.BlockSpec((tile_b, tile_n), lambda i, j: (i, j))
    out_shape = (jax.ShapeDtypeStruct((pB, n_genes_pad), jnp.float32),
                 jax.ShapeDtypeStruct((pB, n_genes_pad), jnp.float32))

    def build_in_specs(single_buffer_weights):
        def resident(shape):
            # Constant-index (VMEM-resident) params: single-buffer if supported.
            if single_buffer_weights and hasattr(pl, "Buffered"):
                try:
                    return pl.BlockSpec(shape, lambda i, j: (0, 0),
                                        pipeline_mode=pl.Buffered(1))
                except TypeError:
                    pass
            return pl.BlockSpec(shape, lambda i, j: (0, 0))

        specs = [pl.BlockSpec((tile_b, n_in), lambda i, j: (i, 0))]
        for branch_flat in (dec_flat, th_flat):
            for l in range(num_hidden):
                specs.append(resident(branch_flat[2 * l].shape))       # w_l
                specs.append(resident(branch_flat[2 * l + 1].shape))   # pp_l
            p_last = branch_flat[2 * num_hidden].shape[0]
            specs.append(pl.BlockSpec((p_last, tile_n), lambda i, j: (0, j)))
            specs.append(pl.BlockSpec((1, tile_n), lambda i, j: (0, j)))
        return specs

    # ---- Explicit VMEM budget (resident weights + streamed blocks + IO tiles). ----
    itemsize_c = jnp.dtype(compute_dtype).itemsize
    resident_bytes = sum(int(p.size) * p.dtype.itemsize
                         for f in (dec_flat, th_flat)
                         for p in f[:2 * num_hidden])
    p_last = dec_flat[2 * num_hidden].shape[0]
    streamed_bytes = 2 * 2 * (p_last * tile_n * itemsize_c + tile_n * 4)
    io_bytes = 2 * tile_b * n_in * 4 + 2 * 2 * tile_b * tile_n * 4
    est = resident_bytes + streamed_bytes + io_bytes
    vmem_limit = int(min(max(2 * est, 32 * 1024 * 1024), 64 * 1024 * 1024))

    kernel = _make_decoder_kernel(num_hidden, tuple(dec_dims), compute_dtype)

    def run(single_buffer_weights):
        return pl.pallas_call(
            kernel,
            out_shape=out_shape,
            grid=grid,
            in_specs=build_in_specs(single_buffer_weights),
            out_specs=(out_spec, out_spec),
            compiler_params=pltpu.CompilerParams(
                dimension_semantics=("parallel", "parallel"),
                vmem_limit_bytes=vmem_limit),
        )(x, *params)

    try:
        mean_pad, theta_pad = run(True)
    except Exception:
        # pipeline_mode=pl.Buffered(1) unsupported -> default double buffering.
        mean_pad, theta_pad = run(False)

    return {"mean": mean_pad[:B, :n_genes], "theta": theta_pad[:B, :n_genes]}


def init_branch_params(key, dims):
    """PyTorch-like init. Linear W stored as (in, out); LayerNorm gamma=1, beta=0."""
    hidden_params = []
    last_params = None
    n_layers = len(dims) - 1
    keys = jax.random.split(key, n_layers * 2)
    for i in range(n_layers):
        fan_in, fan_out = dims[i], dims[i + 1]
        bound = 1.0 / math.sqrt(fan_in)
        w = jax.random.uniform(keys[2 * i], (fan_in, fan_out),
                               minval=-bound, maxval=bound, dtype=jnp.float32)
        b = jax.random.uniform(keys[2 * i + 1], (1, fan_out),
                               minval=-bound, maxval=bound, dtype=jnp.float32)
        if i < n_layers - 1:
            gamma = jnp.ones((1, fan_out), jnp.float32)
            beta = jnp.zeros((1, fan_out), jnp.float32)
            hidden_params.append((w, b, gamma, beta))
        else:
            last_params = (w, b)
    return hidden_params, last_params


def _reference_branch(x, layer_params, last_params, apply_exp, eps=_LN_EPS):
    """Pure-JAX f32 reference matching the PyTorch module in eval mode."""
    hp = jax.lax.Precision.HIGHEST
    h = x
    for (w, b, g, bt) in layer_params:
        h = jnp.dot(h, w, precision=hp) + b
        mu = jnp.mean(h, axis=-1, keepdims=True)
        var = jnp.mean((h - mu) ** 2, axis=-1, keepdims=True)
        h = (h - mu) / jnp.sqrt(var + eps) * g + bt
        h = jnp.maximum(h, 0.0)
    w, b = last_params
    y = jnp.dot(h, w, precision=hp) + b
    sp = jnp.where(y > 20.0, y, jnp.log1p(jnp.exp(jnp.minimum(y, 20.0))))
    return jnp.exp(sp) if apply_exp else sp


if __name__ == "__main__":
    # Small shapes consistent with the module.
    B = 8
    n_latent = 16
    num_clusters = 8
    hidden_dims = [32, 64]
    n_genes = 40
    dims = [n_latent + num_clusters] + hidden_dims + [n_genes]

    key = jax.random.PRNGKey(0)
    k_z, k_m, k_dec, k_theta = jax.random.split(key, 4)

    z = jax.random.normal(k_z, (B, n_latent), dtype=jnp.float32)
    memberships = jax.nn.softmax(
        jax.random.normal(k_m, (B, num_clusters), dtype=jnp.float32), axis=-1)

    dec_params = init_branch_params(k_dec, dims)
    theta_params = init_branch_params(k_theta, dims)

    # Pure-JAX reference on the original (unsplit / unpadded) parameters.
    x_cat = jnp.concatenate([z, memberships], axis=1)
    ref_mean = _reference_branch(x_cat, dec_params[0], dec_params[1], False)
    ref_theta = _reference_branch(x_cat, theta_params[0], theta_params[1], True)

    # 1) Exact-semantics check: pure f32 matmul path.
    out32 = decoder_forward(z, memberships, dec_params, theta_params, n_genes,
                            compute_dtype=jnp.float32)
    out32 = jax.block_until_ready(out32)
    assert out32["mean"].shape == (B, n_genes)
    assert out32["theta"].shape == (B, n_genes)
    assert jnp.allclose(out32["mean"], ref_mean, rtol=5e-3, atol=5e-3)
    assert jnp.allclose(out32["theta"], ref_theta, rtol=5e-3, atol=5e-3)

    # 2) Default fast path: bf16 matmul operands, f32 accumulation / epilogue.
    out16 = decoder_forward(z, memberships, dec_params, theta_params, n_genes)
    out16 = jax.block_until_ready(out16)
    assert out16["mean"].shape == (B, n_genes)
    assert out16["theta"].shape == (B, n_genes)
    assert jnp.allclose(out16["mean"], ref_mean, rtol=5e-2, atol=5e-2)
    assert jnp.allclose(out16["theta"], ref_theta, rtol=5e-2, atol=5e-2)

    print("KERNEL_OK")
</pallas_src>

<mosaic_0001>
module attributes {stable_mosaic.version = 11 : i64} {
  func.func @kernel(%arg0: i32, %arg1: i32, %arg2: memref<8x24xf32, #tpu.memory_space<vmem>>, %arg3: memref<24x128xf32, #tpu.memory_space<vmem>>, %arg4: memref<3x128xf32, #tpu.memory_space<vmem>>, %arg5: memref<128x128xf32, #tpu.memory_space<vmem>>, %arg6: memref<3x128xf32, #tpu.memory_space<vmem>>, %arg7: memref<128x128xf32, #tpu.memory_space<vmem>>, %arg8: memref<1x128xf32, #tpu.memory_space<vmem>>, %arg9: memref<24x128xf32, #tpu.memory_space<vmem>>, %arg10: memref<3x128xf32, #tpu.memory_space<vmem>>, %arg11: memref<128x128xf32, #tpu.memory_space<vmem>>, %arg12: memref<3x128xf32, #tpu.memory_space<vmem>>, %arg13: memref<128x128xf32, #tpu.memory_space<vmem>>, %arg14: memref<1x128xf32, #tpu.memory_space<vmem>>, %arg15: memref<8x128xf32, #tpu.memory_space<vmem>>, %arg16: memref<8x128xf32, #tpu.memory_space<vmem>>) attributes {dimension_semantics = [#tpu.dimension_semantics<parallel>, #tpu.dimension_semantics<parallel>], iteration_bounds = array<i64: 1, 1>, scalar_prefetch = 0 : i64, scratch_operands = 0 : i64, tpu.core_type = #tpu.core_type<tc>, window_params = [{transform_indices = @transform_0, window_bounds = array<i64: 8, 24>}, {pipeline_mode = #tpu.pipeline_mode<synchronous>, transform_indices = @transform_1, window_bounds = array<i64: 24, 128>}, {pipeline_mode = #tpu.pipeline_mode<synchronous>, transform_indices = @transform_2, window_bounds = array<i64: 3, 128>}, {pipeline_mode = #tpu.pipeline_mode<synchronous>, transform_indices = @transform_3, window_bounds = array<i64: 128, 128>}, {pipeline_mode = #tpu.pipeline_mode<synchronous>, transform_indices = @transform_4, window_bounds = array<i64: 3, 128>}, {transform_indices = @transform_5, window_bounds = array<i64: 128, 128>}, {transform_indices = @transform_6, window_bounds = array<i64: 1, 128>}, {pipeline_mode = #tpu.pipeline_mode<synchronous>, transform_indices = @transform_7, window_bounds = array<i64: 24, 128>}, {pipeline_mode = #tpu.pipeline_mode<synchronous>, transform_indices = @transform_8, window_bounds = array<i64: 3, 128>}, {pipeline_mode = #tpu.pipeline_mode<synchronous>, transform_indices = @transform_9, window_bounds = array<i64: 128, 128>}, {pipeline_mode = #tpu.pipeline_mode<synchronous>, transform_indices = @transform_10, window_bounds = array<i64: 3, 128>}, {transform_indices = @transform_11, window_bounds = array<i64: 128, 128>}, {transform_indices = @transform_12, window_bounds = array<i64: 1, 128>}, {transform_indices = @transform_13, window_bounds = array<i64: 8, 128>}, {transform_indices = @transform_14, window_bounds = array<i64: 8, 128>}]} {
    %c0 = arith.constant 0 : index
    %c0_0 = arith.constant 0 : index
    %0 = vector.load %arg2[%c0, %c0_0] : memref<8x24xf32, #tpu.memory_space<vmem>>, vector<8x24xf32>
    %c0_1 = arith.constant 0 : index
    %c0_2 = arith.constant 0 : index
    %1 = vector.load %arg3[%c0_1, %c0_2] : memref<24x128xf32, #tpu.memory_space<vmem>>, vector<24x128xf32>
    %cst = arith.constant dense<0.000000e+00> : vector<8x128xf32>
    %2 = tpu.matmul %0, %1, %cst {dimension_numbers = #tpu.dot_dimension_numbers<[1], [0], [0], [1], [0, 0, 1, 1], [], []>} : vector<8x24xf32>, vector<24x128xf32>, vector<8x128xf32> -> vector<8x128xf32>
    %c0_3 = arith.constant 0 : index
    %c0_4 = arith.constant 0 : index
    %3 = vector.load %arg4[%c0_3, %c0_4] : memref<3x128xf32, #tpu.memory_space<vmem>>, vector<1x128xf32>
    %4 = vector.broadcast %3 : vector<1x128xf32> to vector<8x128xf32>
    %5 = arith.addf %2, %4 : vector<8x128xf32>
    %c1 = arith.constant 1 : index
    %c0_5 = arith.constant 0 : index
    %6 = vector.load %arg4[%c1, %c0_5] : memref<3x128xf32, #tpu.memory_space<vmem>>, vector<1x128xf32>
    %c2 = arith.constant 2 : index
    %c0_6 = arith.constant 0 : index
    %7 = vector.load %arg4[%c2, %c0_6] : memref<3x128xf32, #tpu.memory_space<vmem>>, vector<1x128xf32>
    %cst_7 = arith.constant dense<0.000000e+00> : vector<8xf32>
    %8 = vector.multi_reduction <add>, %5, %cst_7 [1] : vector<8x128xf32> to vector<8xf32>
    %9 = vector.shape_cast %8 : vector<8xf32> to vector<8x1xf32>
    %cst_8 = arith.constant 3.125000e-02 : f32
    %10 = vector.broadcast %cst_8 : f32 to vector<8x1xf32>
    %11 = arith.mulf %9, %10 : vector<8x1xf32>
    %12 = vector.broadcast %11 : vector<8x1xf32> to vector<8x128xf32>
    %13 = arith.subf %5, %12 : vector<8x128xf32>
    %14 = tpu.iota {dimensions = array<i32: 1>} : vector<8x128xi32>
    %c32_i32 = arith.constant 32 : i32
    %15 = vector.broadcast %c32_i32 : i32 to vector<8x128xi32>
    %16 = arith.cmpi slt, %14, %15 : vector<8x128xi32>
    %cst_9 = arith.constant 0.000000e+00 : f32
    %17 = vector.broadcast %cst_9 : f32 to vector<8x128xf32>
    %18 = arith.select %16, %13, %17 : vector<8x128xi1>, vector<8x128xf32>
    %19 = arith.mulf %18, %18 : vector<8x128xf32>
    %cst_10 = arith.constant dense<0.000000e+00> : vector<8xf32>
    %20 = vector.multi_reduction <add>, %19, %cst_10 [1] : vector<8x128xf32> to vector<8xf32>
    %21 = vector.shape_cast %20 : vector<8xf32> to vector<8x1xf32>
    %cst_11 = arith.constant 3.125000e-02 : f32
    %22 = vector.broadcast %cst_11 : f32 to vector<8x1xf32>
    %23 = arith.mulf %21, %22 : vector<8x1xf32>
    %cst_12 = arith.constant 9.99999974E-6 : f32
    %24 = vector.broadcast %cst_12 : f32 to vector<8x1xf32>
    %25 = arith.addf %23, %24 : vector<8x1xf32>
    %26 = math.rsqrt %25 : vector<8x1xf32>
    %27 = vector.broadcast %26 : vector<8x1xf32> to vector<8x128xf32>
    %28 = arith.mulf %18, %27 : vector<8x128xf32>
    %29 = vector.broadcast %6 : vector<1x128xf32> to vector<8x128xf32>
    %30 = arith.mulf %28, %29 : vector<8x128xf32>
    %31 = vector.broadcast %7 : vector<1x128xf32> to vector<8x128xf32>
    %32 = arith.addf %30, %31 : vector<8x128xf32>
    %cst_13 = arith.constant 0.000000e+00 : f32
    %33 = vector.broadcast %cst_13 : f32 to vector<8x128xf32>
    %34 = arith.maximumf %32, %33 : vector<8x128xf32>
    %c0_14 = arith.constant 0 : index
    %c0_15 = arith.constant 0 : index
    %35 = vector.load %arg5[%c0_14, %c0_15] : memref<128x128xf32, #tpu.memory_space<vmem>>, vector<128x128xf32>
    %cst_16 = arith.constant dense<0.000000e+00> : vector<8x128xf32>
    %36 = tpu.matmul %34, %35, %cst_16 {dimension_numbers = #tpu.dot_dimension_numbers<[1], [0], [0], [1], [0, 0, 1, 1], [], []>} : vector<8x128xf32>, vector<128x128xf32>, vector<8x128xf32> -> vector<8x128xf32>
    %c0_17 = arith.constant 0 : index
    %c0_18 = arith.constant 0 : index
    %37 = vector.load %arg6[%c0_17, %c0_18] : memref<3x128xf32, #tpu.memory_space<vmem>>, vector<1x128xf32>
    %38 = vector.broadcast %37 : vector<1x128xf32> to vector<8x128xf32>
    %39 = arith.addf %36, %38 : vector<8x128xf32>
    %c1_19 = arith.constant 1 : index
    %c0_20 = arith.constant 0 : index
    %40 = vector.load %arg6[%c1_19, %c0_20] : memref<3x128xf32, #tpu.memory_space<vmem>>, vector<1x128xf32>
    %c2_21 = arith.constant 2 : index
    %c0_22 = arith.constant 0 : index
    %41 = vector.load %arg6[%c2_21, %c0_22] : memref<3x128xf32, #tpu.memory_space<vmem>>, vector<1x128xf32>
    %cst_23 = arith.constant dense<0.000000e+00> : vector<8xf32>
    %42 = vector.multi_reduction <add>, %39, %cst_23 [1] : vector<8x128xf32> to vector<8xf32>
    %43 = vector.shape_cast %42 : vector<8xf32> to vector<8x1xf32>
    %cst_24 = arith.constant 1.562500e-02 : f32
    %44 = vector.broadcast %cst_24 : f32 to vector<8x1xf32>
    %45 = arith.mulf %43, %44 : vector<8x1xf32>
    %46 = vector.broadcast %45 : vector<8x1xf32> to vector<8x128xf32>
    %47 = arith.subf %39, %46 : vector<8x128xf32>
    %48 = tpu.iota {dimensions = array<i32: 1>} : vector<8x128xi32>
    %c64_i32 = arith.constant 64 : i32
    %49 = vector.broadcast %c64_i32 : i32 to vector<8x128xi32>
    %50 = arith.cmpi slt, %48, %49 : vector<8x128xi32>
    %cst_25 = arith.constant 0.000000e+00 : f32
    %51 = vector.broadcast %cst_25 : f32 to vector<8x128xf32>
    %52 = arith.select %50, %47, %51 : vector<8x128xi1>, vector<8x128xf32>
    %53 = arith.mulf %52, %52 : vector<8x128xf32>
    %cst_26 = arith.constant dense<0.000000e+00> : vector<8xf32>
    %54 = vector.multi_reduction <add>, %53, %cst_26 [1] : vector<8x128xf32> to vector<8xf32>
    %55 = vector.shape_cast %54 : vector<8xf32> to vector<8x1xf32>
    %cst_27 = arith.constant 1.562500e-02 : f32
    %56 = vector.broadcast %cst_27 : f32 to vector<8x1xf32>
    %57 = arith.mulf %55, %56 : vector<8x1xf32>
    %cst_28 = arith.constant 9.99999974E-6 : f32
    %58 = vector.broadcast %cst_28 : f32 to vector<8x1xf32>
    %59 = arith.addf %57, %58 : vector<8x1xf32>
    %60 = math.rsqrt %59 : vector<8x1xf32>
    %61 = vector.broadcast %60 : vector<8x1xf32> to vector<8x128xf32>
    %62 = arith.mulf %52, %61 : vector<8x128xf32>
    %63 = vector.broadcast %40 : vector<1x128xf32> to vector<8x128xf32>
    %64 = arith.mulf %62, %63 : vector<8x128xf32>
    %65 = vector.broadcast %41 : vector<1x128xf32> to vector<8x128xf32>
    %66 = arith.addf %64, %65 : vector<8x128xf32>
    %cst_29 = arith.constant 0.000000e+00 : f32
    %67 = vector.broadcast %cst_29 : f32 to vector<8x128xf32>
    %68 = arith.maximumf %66, %67 : vector<8x128xf32>
    %c0_30 = arith.constant 0 : index
    %c0_31 = arith.constant 0 : index
    %69 = vector.load %arg7[%c0_30, %c0_31] : memref<128x128xf32, #tpu.memory_space<vmem>>, vector<128x128xf32>
    %c0_32 = arith.constant 0 : index
    %c0_33 = arith.constant 0 : index
    %70 = vector.load %arg8[%c0_32, %c0_33] : memref<1x128xf32, #tpu.memory_space<vmem>>, vector<1x128xf32>
    %cst_34 = arith.constant dense<0.000000e+00> : vector<8x128xf32>
    %71 = tpu.matmul %68, %69, %cst_34 {dimension_numbers = #tpu.dot_dimension_numbers<[1], [0], [0], [1], [0, 0, 1, 1], [], []>} : vector<8x128xf32>, vector<128x128xf32>, vector<8x128xf32> -> vector<8x128xf32>
    %72 = vector.broadcast %70 : vector<1x128xf32> to vector<8x128xf32>
    %73 = arith.addf %71, %72 : vector<8x128xf32>
    %cst_35 = arith.constant 2.000000e+01 : f32
    %74 = vector.broadcast %cst_35 : f32 to vector<8x128xf32>
    %75 = arith.cmpf ogt, %73, %74 : vector<8x128xf32>
    %cst_36 = arith.constant 2.000000e+01 : f32
    %76 = vector.broadcast %cst_36 : f32 to vector<8x128xf32>
    %77 = arith.minimumf %73, %76 : vector<8x128xf32>
    %78 = math.exp %77 : vector<8x128xf32>
    %79 = math.log1p %78 : vector<8x128xf32>
    %80 = arith.select %75, %73, %79 : vector<8x128xi1>, vector<8x128xf32>
    %c0_37 = arith.constant 0 : index
    %c0_38 = arith.constant 0 : index
    %81 = vector.load %arg15[%c0_37, %c0_38] : memref<8x128xf32, #tpu.memory_space<vmem>>, vector<8x128xf32>
    tpu.vector_store %arg15[%c0_37, %c0_38], %80 {strides = array<i32>} : memref<8x128xf32, #tpu.memory_space<vmem>>, vector<8x128xf32>,
    %c0_39 = arith.constant 0 : index
    %c0_40 = arith.constant 0 : index
    %82 = vector.load %arg9[%c0_39, %c0_40] : memref<24x128xf32, #tpu.memory_space<vmem>>, vector<24x128xf32>
    %cst_41 = arith.constant dense<0.000000e+00> : vector<8x128xf32>
    %83 = tpu.matmul %0, %82, %cst_41 {dimension_numbers = #tpu.dot_dimension_numbers<[1], [0], [0], [1], [0, 0, 1, 1], [], []>} : vector<8x24xf32>, vector<24x128xf32>, vector<8x128xf32> -> vector<8x128xf32>
    %c0_42 = arith.constant 0 : index
    %c0_43 = arith.constant 0 : index
    %84 = vector.load %arg10[%c0_42, %c0_43] : memref<3x128xf32, #tpu.memory_space<vmem>>, vector<1x128xf32>
    %85 = vector.broadcast %84 : vector<1x128xf32> to vector<8x128xf32>
    %86 = arith.addf %83, %85 : vector<8x128xf32>
    %c1_44 = arith.constant 1 : index
    %c0_45 = arith.constant 0 : index
    %87 = vector.load %arg10[%c1_44, %c0_45] : memref<3x128xf32, #tpu.memory_space<vmem>>, vector<1x128xf32>
    %c2_46 = arith.constant 2 : index
    %c0_47 = arith.constant 0 : index
    %88 = vector.load %arg10[%c2_46, %c0_47] : memref<3x128xf32, #tpu.memory_space<vmem>>, vector<1x128xf32>
    %cst_48 = arith.constant dense<0.000000e+00> : vector<8xf32>
    %89 = vector.multi_reduction <add>, %86, %cst_48 [1] : vector<8x128xf32> to vector<8xf32>
    %90 = vector.shape_cast %89 : vector<8xf32> to vector<8x1xf32>
    %cst_49 = arith.constant 3.125000e-02 : f32
    %91 = vector.broadcast %cst_49 : f32 to vector<8x1xf32>
    %92 = arith.mulf %90, %91 : vector<8x1xf32>
    %93 = vector.broadcast %92 : vector<8x1xf32> to vector<8x128xf32>
    %94 = arith.subf %86, %93 : vector<8x128xf32>
    %95 = tpu.iota {dimensions = array<i32: 1>} : vector<8x128xi32>
    %c32_i32_50 = arith.constant 32 : i32
    %96 = vector.broadcast %c32_i32_50 : i32 to vector<8x128xi32>
    %97 = arith.cmpi slt, %95, %96 : vector<8x128xi32>
    %cst_51 = arith.constant 0.000000e+00 : f32
    %98 = vector.broadcast %cst_51 : f32 to vector<8x128xf32>
    %99 = arith.select %97, %94, %98 : vector<8x128xi1>, vector<8x128xf32>
    %100 = arith.mulf %99, %99 : vector<8x128xf32>
    %cst_52 = arith.constant dense<0.000000e+00> : vector<8xf32>
    %101 = vector.multi_reduction <add>, %100, %cst_52 [1] : vector<8x128xf32> to vector<8xf32>
    %102 = vector.shape_cast %101 : vector<8xf32> to vector<8x1xf32>
    %cst_53 = arith.constant 3.125000e-02 : f32
    %103 = vector.broadcast %cst_53 : f32 to vector<8x1xf32>
    %104 = arith.mulf %102, %103 : vector<8x1xf32>
    %cst_54 = arith.constant 9.99999974E-6 : f32
    %105 = vector.broadcast %cst_54 : f32 to vector<8x1xf32>
    %106 = arith.addf %104, %105 : vector<8x1xf32>
    %107 = math.rsqrt %106 : vector<8x1xf32>
    %108 = vector.broadcast %107 : vector<8x1xf32> to vector<8x128xf32>
    %109 = arith.mulf %99, %108 : vector<8x128xf32>
    %110 = vector.broadcast %87 : vector<1x128xf32> to vector<8x128xf32>
    %111 = arith.mulf %109, %110 : vector<8x128xf32>
    %112 = vector.broadcast %88 : vector<1x128xf32> to vector<8x128xf32>
    %113 = arith.addf %111, %112 : vector<8x128xf32>
    %cst_55 = arith.constant 0.000000e+00 : f32
    %114 = vector.broadcast %cst_55 : f32 to vector<8x128xf32>
    %115 = arith.maximumf %113, %114 : vector<8x128xf32>
    %c0_56 = arith.constant 0 : index
    %c0_57 = arith.constant 0 : index
    %116 = vector.load %arg11[%c0_56, %c0_57] : memref<128x128xf32, #tpu.memory_space<vmem>>, vector<128x128xf32>
    %cst_58 = arith.constant dense<0.000000e+00> : vector<8x128xf32>
    %117 = tpu.matmul %115, %116, %cst_58 {dimension_numbers = #tpu.dot_dimension_numbers<[1], [0], [0], [1], [0, 0, 1, 1], [], []>} : vector<8x128xf32>, vector<128x128xf32>, vector<8x128xf32> -> vector<8x128xf32>
    %c0_59 = arith.constant 0 : index
    %c0_60 = arith.constant 0 : index
    %118 = vector.load %arg12[%c0_59, %c0_60] : memref<3x128xf32, #tpu.memory_space<vmem>>, vector<1x128xf32>
    %119 = vector.broadcast %118 : vector<1x128xf32> to vector<8x128xf32>
    %120 = arith.addf %117, %119 : vector<8x128xf32>
    %c1_61 = arith.constant 1 : index
    %c0_62 = arith.constant 0 : index
    %121 = vector.load %arg12[%c1_61, %c0_62] : memref<3x128xf32, #tpu.memory_space<vmem>>, vector<1x128xf32>
    %c2_63 = arith.constant 2 : index
    %c0_64 = arith.constant 0 : index
    %122 = vector.load %arg12[%c2_63, %c0_64] : memref<3x128xf32, #tpu.memory_space<vmem>>, vector<1x128xf32>
    %cst_65 = arith.constant dense<0.000000e+00> : vector<8xf32>
    %123 = vector.multi_reduction <add>, %120, %cst_65 [1] : vector<8x128xf32> to vector<8xf32>
    %124 = vector.shape_cast %123 : vector<8xf32> to vector<8x1xf32>
    %cst_66 = arith.constant 1.562500e-02 : f32
    %125 = vector.broadcast %cst_66 : f32 to vector<8x1xf32>
    %126 = arith.mulf %124, %125 : vector<8x1xf32>
    %127 = vector.broadcast %126 : vector<8x1xf32> to vector<8x128xf32>
    %128 = arith.subf %120, %127 : vector<8x128xf32>
    %129 = tpu.iota {dimensions = array<i32: 1>} : vector<8x128xi32>
    %c64_i32_67 = arith.constant 64 : i32
    %130 = vector.broadcast %c64_i32_67 : i32 to vector<8x128xi32>
    %131 = arith.cmpi slt, %129, %130 : vector<8x128xi32>
    %cst_68 = arith.constant 0.000000e+00 : f32
    %132 = vector.broadcast %cst_68 : f32 to vector<8x128xf32>
    %133 = arith.select %131, %128, %132 : vector<8x128xi1>, vector<8x128xf32>
    %134 = arith.mulf %133, %133 : vector<8x128xf32>
    %cst_69 = arith.constant dense<0.000000e+00> : vector<8xf32>
    %135 = vector.multi_reduction <add>, %134, %cst_69 [1] : vector<8x128xf32> to vector<8xf32>
    %136 = vector.shape_cast %135 : vector<8xf32> to vector<8x1xf32>
    %cst_70 = arith.constant 1.562500e-02 : f32
    %137 = vector.broadcast %cst_70 : f32 to vector<8x1xf32>
    %138 = arith.mulf %136, %137 : vector<8x1xf32>
    %cst_71 = arith.constant 9.99999974E-6 : f32
    %139 = vector.broadcast %cst_71 : f32 to vector<8x1xf32>
    %140 = arith.addf %138, %139 : vector<8x1xf32>
    %141 = math.rsqrt %140 : vector<8x1xf32>
    %142 = vector.broadcast %141 : vector<8x1xf32> to vector<8x128xf32>
    %143 = arith.mulf %133, %142 : vector<8x128xf32>
    %144 = vector.broadcast %121 : vector<1x128xf32> to vector<8x128xf32>
    %145 = arith.mulf %143, %144 : vector<8x128xf32>
    %146 = vector.broadcast %122 : vector<1x128xf32> to vector<8x128xf32>
    %147 = arith.addf %145, %146 : vector<8x128xf32>
    %cst_72 = arith.constant 0.000000e+00 : f32
    %148 = vector.broadcast %cst_72 : f32 to vector<8x128xf32>
    %149 = arith.maximumf %147, %148 : vector<8x128xf32>
    %c0_73 = arith.constant 0 : index
    %c0_74 = arith.constant 0 : index
    %150 = vector.load %arg13[%c0_73, %c0_74] : memref<128x128xf32, #tpu.memory_space<vmem>>, vector<128x128xf32>
    %c0_75 = arith.constant 0 : index
    %c0_76 = arith.constant 0 : index
    %151 = vector.load %arg14[%c0_75, %c0_76] : memref<1x128xf32, #tpu.memory_space<vmem>>, vector<1x128xf32>
    %cst_77 = arith.constant dense<0.000000e+00> : vector<8x128xf32>
    %152 = tpu.matmul %149, %150, %cst_77 {dimension_numbers = #tpu.dot_dimension_numbers<[1], [0], [0], [1], [0, 0, 1, 1], [], []>} : vector<8x128xf32>, vector<128x128xf32>, vector<8x128xf32> -> vector<8x128xf32>
    %153 = vector.broadcast %151 : vector<1x128xf32> to vector<8x128xf32>
    %154 = arith.addf %152, %153 : vector<8x128xf32>
    %155 = math.exp %154 : vector<8x128xf32>
    %cst_78 = arith.constant 1.000000e+00 : f32
    %156 = vector.broadcast %cst_78 : f32 to vector<8x128xf32>
    %157 = arith.addf %156, %155 : vector<8x128xf32>
    %c0_79 = arith.constant 0 : index
    %c0_80 = arith.constant 0 : index
    %158 = vector.load %arg16[%c0_79, %c0_80] : memref<8x128xf32, #tpu.memory_space<vmem>>, vector<8x128xf32>
    tpu.vector_store %arg16[%c0_79, %c0_80], %157 {strides = array<i32>} : memref<8x128xf32, #tpu.memory_space<vmem>>, vector<8x128xf32>,
    return
  }
  func.func @transform_0(%arg0: i32, %arg1: i32) -> (i32, i32) {
    %c0_i32 = arith.constant 0 : i32
    %c0_i32_0 = arith.constant 0 : i32
    return %arg0, %c0_i32 : i32, i32
  }
  func.func @transform_1(%arg0: i32, %arg1: i32) -> (i32, i32) {
    %c0_i32 = arith.constant 0 : i32
    %c0_i32_0 = arith.constant 0 : i32
    %c0_i32_1 = arith.constant 0 : i32
    return %c0_i32, %c0_i32_0 : i32, i32
  }
  func.func @transform_2(%arg0: i32, %arg1: i32) -> (i32, i32) {
    %c0_i32 = arith.constant 0 : i32
    %c0_i32_0 = arith.constant 0 : i32
    %c0_i32_1 = arith.constant 0 : i32
    return %c0_i32, %c0_i32_0 : i32, i32
  }
  func.func @transform_3(%arg0: i32, %arg1: i32) -> (i32, i32) {
    %c0_i32 = arith.constant 0 : i32
    %c0_i32_0 = arith.constant 0 : i32
    %c0_i32_1 = arith.constant 0 : i32
    return %c0_i32, %c0_i32_0 : i32, i32
  }
  func.func @transform_4(%arg0: i32, %arg1: i32) -> (i32, i32) {
    %c0_i32 = arith.constant 0 : i32
    %c0_i32_0 = arith.constant 0 : i32
    %c0_i32_1 = arith.constant 0 : i32
    return %c0_i32, %c0_i32_0 : i32, i32
  }
  func.func @transform_5(%arg0: i32, %arg1: i32) -> (i32, i32) {
    %c0_i32 = arith.constant 0 : i32
    %c0_i32_0 = arith.constant 0 : i32
    return %c0_i32, %arg1 : i32, i32
  }
  func.func @transform_6(%arg0: i32, %arg1: i32) -> (i32, i32) {
    %c0_i32 = arith.constant 0 : i32
    %c0_i32_0 = arith.constant 0 : i32
    return %c0_i32, %arg1 : i32, i32
  }
  func.func @transform_7(%arg0: i32, %arg1: i32) -> (i32, i32) {
    %c0_i32 = arith.constant 0 : i32
    %c0_i32_0 = arith.constant 0 : i32
    %c0_i32_1 = arith.constant 0 : i32
    return %c0_i32, %c0_i32_0 : i32, i32
  }
  func.func @transform_8(%arg0: i32, %arg1: i32) -> (i32, i32) {
    %c0_i32 = arith.constant 0 : i32
    %c0_i32_0 = arith.constant 0 : i32
    %c0_i32_1 = arith.constant 0 : i32
    return %c0_i32, %c0_i32_0 : i32, i32
  }
  func.func @transform_9(%arg0: i32, %arg1: i32) -> (i32, i32) {
    %c0_i32 = arith.constant 0 : i32
    %c0_i32_0 = arith.constant 0 : i32
    %c0_i32_1 = arith.constant 0 : i32
    return %c0_i32, %c0_i32_0 : i32, i32
  }
  func.func @transform_10(%arg0: i32, %arg1: i32) -> (i32, i32) {
    %c0_i32 = arith.constant 0 : i32
    %c0_i32_0 = arith.constant 0 : i32
    %c0_i32_1 = arith.constant 0 : i32
    return %c0_i32, %c0_i32_0 : i32, i32
  }
  func.func @transform_11(%arg0: i32, %arg1: i32) -> (i32, i32) {
    %c0_i32 = arith.constant 0 : i32
    %c0_i32_0 = arith.constant 0 : i32
    return %c0_i32, %arg1 : i32, i32
  }
  func.func @transform_12(%arg0: i32, %arg1: i32) -> (i32, i32) {
    %c0_i32 = arith.constant 0 : i32
    %c0_i32_0 = arith.constant 0 : i32
    return %c0_i32, %arg1 : i32, i32
  }
  func.func @transform_13(%arg0: i32, %arg1: i32) -> (i32, i32) {
    %c0_i32 = arith.constant 0 : i32
    return %arg0, %arg1 : i32, i32
  }
  func.func @transform_14(%arg0: i32, %arg1: i32) -> (i32, i32) {
    %c0_i32 = arith.constant 0 : i32
    return %arg0, %arg1 : i32, i32
  }
}

module attributes {stable_mosaic.version = 11 : i64} {
  func.func @kernel(%arg0: i32, %arg1: i32, %arg2: memref<8x24xf32, #tpu.memory_space<vmem>>, %arg3: memref<24x128xf32, #tpu.memory_space<vmem>>, %arg4: memref<3x128xf32, #tpu.memory_space<vmem>>, %arg5: memref<128x128xf32, #tpu.memory_space<vmem>>, %arg6: memref<3x128xf32, #tpu.memory_space<vmem>>, %arg7: memref<128x128xf32, #tpu.memory_space<vmem>>, %arg8: memref<1x128xf32, #tpu.memory_space<vmem>>, %arg9: memref<24x128xf32, #tpu.memory_space<vmem>>, %arg10: memref<3x128xf32, #tpu.memory_space<vmem>>, %arg11: memref<128x128xf32, #tpu.memory_space<vmem>>, %arg12: memref<3x128xf32, #tpu.memory_space<vmem>>, %arg13: memref<128x128xf32, #tpu.memory_space<vmem>>, %arg14: memref<1x128xf32, #tpu.memory_space<vmem>>, %arg15: memref<8x128xf32, #tpu.memory_space<vmem>>, %arg16: memref<8x128xf32, #tpu.memory_space<vmem>>) attributes {dimension_semantics = [#tpu.dimension_semantics<parallel>, #tpu.dimension_semantics<parallel>], iteration_bounds = array<i64: 1, 1>, scalar_prefetch = 0 : i64, scratch_operands = 0 : i64, tpu.core_type = #tpu.core_type<tc>, window_params = [{transform_indices = @transform_0, window_bounds = array<i64: 8, 24>}, {pipeline_mode = #tpu.pipeline_mode<synchronous>, transform_indices = @transform_1, window_bounds = array<i64: 24, 128>}, {pipeline_mode = #tpu.pipeline_mode<synchronous>, transform_indices = @transform_2, window_bounds = array<i64: 3, 128>}, {pipeline_mode = #tpu.pipeline_mode<synchronous>, transform_indices = @transform_3, window_bounds = array<i64: 128, 128>}, {pipeline_mode = #tpu.pipeline_mode<synchronous>, transform_indices = @transform_4, window_bounds = array<i64: 3, 128>}, {transform_indices = @transform_5, window_bounds = array<i64: 128, 128>}, {transform_indices = @transform_6, window_bounds = array<i64: 1, 128>}, {pipeline_mode = #tpu.pipeline_mode<synchronous>, transform_indices = @transform_7, window_bounds = array<i64: 24, 128>}, {pipeline_mode = #tpu.pipeline_mode<synchronous>, transform_indices = @transform_8, window_bounds = array<i64: 3, 128>}, {pipeline_mode = #tpu.pipeline_mode<synchronous>, transform_indices = @transform_9, window_bounds = array<i64: 128, 128>}, {pipeline_mode = #tpu.pipeline_mode<synchronous>, transform_indices = @transform_10, window_bounds = array<i64: 3, 128>}, {transform_indices = @transform_11, window_bounds = array<i64: 128, 128>}, {transform_indices = @transform_12, window_bounds = array<i64: 1, 128>}, {transform_indices = @transform_13, window_bounds = array<i64: 8, 128>}, {transform_indices = @transform_14, window_bounds = array<i64: 8, 128>}]} {
    %c0 = arith.constant 0 : index
    %c0_0 = arith.constant 0 : index
    %0 = vector.load %arg2[%c0, %c0_0] : memref<8x24xf32, #tpu.memory_space<vmem>>, vector<8x24xf32>
    %c0_1 = arith.constant 0 : index
    %c0_2 = arith.constant 0 : index
    %1 = vector.load %arg3[%c0_1, %c0_2] : memref<24x128xf32, #tpu.memory_space<vmem>>, vector<24x128xf32>
    %cst = arith.constant dense<0.000000e+00> : vector<8x128xf32>
    %2 = tpu.matmul %0, %1, %cst {dimension_numbers = #tpu.dot_dimension_numbers<[1], [0], [0], [1], [0, 0, 1, 1], [], []>} : vector<8x24xf32>, vector<24x128xf32>, vector<8x128xf32> -> vector<8x128xf32>
    %c0_3 = arith.constant 0 : index
    %c0_4 = arith.constant 0 : index
    %3 = vector.load %arg4[%c0_3, %c0_4] : memref<3x128xf32, #tpu.memory_space<vmem>>, vector<1x128xf32>
    %4 = vector.broadcast %3 : vector<1x128xf32> to vector<8x128xf32>
    %5 = arith.addf %2, %4 : vector<8x128xf32>
    %c1 = arith.constant 1 : index
    %c0_5 = arith.constant 0 : index
    %6 = vector.load %arg4[%c1, %c0_5] : memref<3x128xf32, #tpu.memory_space<vmem>>, vector<1x128xf32>
    %c2 = arith.constant 2 : index
    %c0_6 = arith.constant 0 : index
    %7 = vector.load %arg4[%c2, %c0_6] : memref<3x128xf32, #tpu.memory_space<vmem>>, vector<1x128xf32>
    %cst_7 = arith.constant dense<0.000000e+00> : vector<8xf32>
    %8 = vector.multi_reduction <add>, %5, %cst_7 [1] : vector<8x128xf32> to vector<8xf32>
    %9 = vector.shape_cast %8 : vector<8xf32> to vector<8x1xf32>
    %cst_8 = arith.constant 3.125000e-02 : f32
    %10 = vector.broadcast %cst_8 : f32 to vector<8x1xf32>
    %11 = arith.mulf %9, %10 : vector<8x1xf32>
    %12 = vector.broadcast %11 : vector<8x1xf32> to vector<8x128xf32>
    %13 = arith.subf %5, %12 : vector<8x128xf32>
    %14 = tpu.iota {dimensions = array<i32: 1>} : vector<8x128xi32>
    %c32_i32 = arith.constant 32 : i32
    %15 = vector.broadcast %c32_i32 : i32 to vector<8x128xi32>
    %16 = arith.cmpi slt, %14, %15 : vector<8x128xi32>
    %cst_9 = arith.constant 0.000000e+00 : f32
    %17 = vector.broadcast %cst_9 : f32 to vector<8x128xf32>
    %18 = arith.select %16, %13, %17 : vector<8x128xi1>, vector<8x128xf32>
    %19 = arith.mulf %18, %18 : vector<8x128xf32>
    %cst_10 = arith.constant dense<0.000000e+00> : vector<8xf32>
    %20 = vector.multi_reduction <add>, %19, %cst_10 [1] : vector<8x128xf32> to vector<8xf32>
    %21 = vector.shape_cast %20 : vector<8xf32> to vector<8x1xf32>
    %cst_11 = arith.constant 3.125000e-02 : f32
    %22 = vector.broadcast %cst_11 : f32 to vector<8x1xf32>
    %23 = arith.mulf %21, %22 : vector<8x1xf32>
    %cst_12 = arith.constant 9.99999974E-6 : f32
    %24 = vector.broadcast %cst_12 : f32 to vector<8x1xf32>
    %25 = arith.addf %23, %24 : vector<8x1xf32>
    %26 = math.rsqrt %25 : vector<8x1xf32>
    %27 = vector.broadcast %26 : vector<8x1xf32> to vector<8x128xf32>
    %28 = arith.mulf %18, %27 : vector<8x128xf32>
    %29 = vector.broadcast %6 : vector<1x128xf32> to vector<8x128xf32>
    %30 = arith.mulf %28, %29 : vector<8x128xf32>
    %31 = vector.broadcast %7 : vector<1x128xf32> to vector<8x128xf32>
    %32 = arith.addf %30, %31 : vector<8x128xf32>
    %cst_13 = arith.constant 0.000000e+00 : f32
    %33 = vector.broadcast %cst_13 : f32 to vector<8x128xf32>
    %34 = arith.maximumf %32, %33 : vector<8x128xf32>
    %c0_14 = arith.constant 0 : index
    %c0_15 = arith.constant 0 : index
    %35 = vector.load %arg5[%c0_14, %c0_15] : memref<128x128xf32, #tpu.memory_space<vmem>>, vector<128x128xf32>
    %cst_16 = arith.constant dense<0.000000e+00> : vector<8x128xf32>
    %36 = tpu.matmul %34, %35, %cst_16 {dimension_numbers = #tpu.dot_dimension_numbers<[1], [0], [0], [1], [0, 0, 1, 1], [], []>} : vector<8x128xf32>, vector<128x128xf32>, vector<8x128xf32> -> vector<8x128xf32>
    %c0_17 = arith.constant 0 : index
    %c0_18 = arith.constant 0 : index
    %37 = vector.load %arg6[%c0_17, %c0_18] : memref<3x128xf32, #tpu.memory_space<vmem>>, vector<1x128xf32>
    %38 = vector.broadcast %37 : vector<1x128xf32> to vector<8x128xf32>
    %39 = arith.addf %36, %38 : vector<8x128xf32>
    %c1_19 = arith.constant 1 : index
    %c0_20 = arith.constant 0 : index
    %40 = vector.load %arg6[%c1_19, %c0_20] : memref<3x128xf32, #tpu.memory_space<vmem>>, vector<1x128xf32>
    %c2_21 = arith.constant 2 : index
    %c0_22 = arith.constant 0 : index
    %41 = vector.load %arg6[%c2_21, %c0_22] : memref<3x128xf32, #tpu.memory_space<vmem>>, vector<1x128xf32>
    %cst_23 = arith.constant dense<0.000000e+00> : vector<8xf32>
    %42 = vector.multi_reduction <add>, %39, %cst_23 [1] : vector<8x128xf32> to vector<8xf32>
    %43 = vector.shape_cast %42 : vector<8xf32> to vector<8x1xf32>
    %cst_24 = arith.constant 1.562500e-02 : f32
    %44 = vector.broadcast %cst_24 : f32 to vector<8x1xf32>
    %45 = arith.mulf %43, %44 : vector<8x1xf32>
    %46 = vector.broadcast %45 : vector<8x1xf32> to vector<8x128xf32>
    %47 = arith.subf %39, %46 : vector<8x128xf32>
    %48 = tpu.iota {dimensions = array<i32: 1>} : vector<8x128xi32>
    %c64_i32 = arith.constant 64 : i32
    %49 = vector.broadcast %c64_i32 : i32 to vector<8x128xi32>
    %50 = arith.cmpi slt, %48, %49 : vector<8x128xi32>
    %cst_25 = arith.constant 0.000000e+00 : f32
    %51 = vector.broadcast %cst_25 : f32 to vector<8x128xf32>
    %52 = arith.select %50, %47, %51 : vector<8x128xi1>, vector<8x128xf32>
    %53 = arith.mulf %52, %52 : vector<8x128xf32>
    %cst_26 = arith.constant dense<0.000000e+00> : vector<8xf32>
    %54 = vector.multi_reduction <add>, %53, %cst_26 [1] : vector<8x128xf32> to vector<8xf32>
    %55 = vector.shape_cast %54 : vector<8xf32> to vector<8x1xf32>
    %cst_27 = arith.constant 1.562500e-02 : f32
    %56 = vector.broadcast %cst_27 : f32 to vector<8x1xf32>
    %57 = arith.mulf %55, %56 : vector<8x1xf32>
    %cst_28 = arith.constant 9.99999974E-6 : f32
    %58 = vector.broadcast %cst_28 : f32 to vector<8x1xf32>
    %59 = arith.addf %57, %58 : vector<8x1xf32>
    %60 = math.rsqrt %59 : vector<8x1xf32>
    %61 = vector.broadcast %60 : vector<8x1xf32> to vector<8x128xf32>
    %62 = arith.mulf %52, %61 : vector<8x128xf32>
    %63 = vector.broadcast %40 : vector<1x128xf32> to vector<8x128xf32>
    %64 = arith.mulf %62, %63 : vector<8x128xf32>
    %65 = vector.broadcast %41 : vector<1x128xf32> to vector<8x128xf32>
    %66 = arith.addf %64, %65 : vector<8x128xf32>
    %cst_29 = arith.constant 0.000000e+00 : f32
    %67 = vector.broadcast %cst_29 : f32 to vector<8x128xf32>
    %68 = arith.maximumf %66, %67 : vector<8x128xf32>
    %c0_30 = arith.constant 0 : index
    %c0_31 = arith.constant 0 : index
    %69 = vector.load %arg7[%c0_30, %c0_31] : memref<128x128xf32, #tpu.memory_space<vmem>>, vector<128x128xf32>
    %c0_32 = arith.constant 0 : index
    %c0_33 = arith.constant 0 : index
    %70 = vector.load %arg8[%c0_32, %c0_33] : memref<1x128xf32, #tpu.memory_space<vmem>>, vector<1x128xf32>
    %cst_34 = arith.constant dense<0.000000e+00> : vector<8x128xf32>
    %71 = tpu.matmul %68, %69, %cst_34 {dimension_numbers = #tpu.dot_dimension_numbers<[1], [0], [0], [1], [0, 0, 1, 1], [], []>} : vector<8x128xf32>, vector<128x128xf32>, vector<8x128xf32> -> vector<8x128xf32>
    %72 = vector.broadcast %70 : vector<1x128xf32> to vector<8x128xf32>
    %73 = arith.addf %71, %72 : vector<8x128xf32>
    %cst_35 = arith.constant 2.000000e+01 : f32
    %74 = vector.broadcast %cst_35 : f32 to vector<8x128xf32>
    %75 = arith.cmpf ogt, %73, %74 : vector<8x128xf32>
    %cst_36 = arith.constant 2.000000e+01 : f32
    %76 = vector.broadcast %cst_36 : f32 to vector<8x128xf32>
    %77 = arith.minimumf %73, %76 : vector<8x128xf32>
    %78 = math.exp %77 : vector<8x128xf32>
    %79 = math.log1p %78 : vector<8x128xf32>
    %80 = arith.select %75, %73, %79 : vector<8x128xi1>, vector<8x128xf32>
    %c0_37 = arith.constant 0 : index
    %c0_38 = arith.constant 0 : index
    %81 = vector.load %arg15[%c0_37, %c0_38] : memref<8x128xf32, #tpu.memory_space<vmem>>, vector<8x128xf32>
    tpu.vector_store %arg15[%c0_37, %c0_38], %80 {strides = array<i32>} : memref<8x128xf32, #tpu.memory_space<vmem>>, vector<8x128xf32>,
    %c0_39 = arith.constant 0 : index
    %c0_40 = arith.constant 0 : index
    %82 = vector.load %arg9[%c0_39, %c0_40] : memref<24x128xf32, #tpu.memory_space<vmem>>, vector<24x128xf32>
    %cst_41 = arith.constant dense<0.000000e+00> : vector<8x128xf32>
    %83 = tpu.matmul %0, %82, %cst_41 {dimension_numbers = #tpu.dot_dimension_numbers<[1], [0], [0], [1], [0, 0, 1, 1], [], []>} : vector<8x24xf32>, vector<24x128xf32>, vector<8x128xf32> -> vector<8x128xf32>
    %c0_42 = arith.constant 0 : index
    %c0_43 = arith.constant 0 : index
    %84 = vector.load %arg10[%c0_42, %c0_43] : memref<3x128xf32, #tpu.memory_space<vmem>>, vector<1x128xf32>
    %85 = vector.broadcast %84 : vector<1x128xf32> to vector<8x128xf32>
    %86 = arith.addf %83, %85 : vector<8x128xf32>
    %c1_44 = arith.constant 1 : index
    %c0_45 = arith.constant 0 : index
    %87 = vector.load %arg10[%c1_44, %c0_45] : memref<3x128xf32, #tpu.memory_space<vmem>>, vector<1x128xf32>
    %c2_46 = arith.constant 2 : index
    %c0_47 = arith.constant 0 : index
    %88 = vector.load %arg10[%c2_46, %c0_47] : memref<3x128xf32, #tpu.memory_space<vmem>>, vector<1x128xf32>
    %cst_48 = arith.constant dense<0.000000e+00> : vector<8xf32>
    %89 = vector.multi_reduction <add>, %86, %cst_48 [1] : vector<8x128xf32> to vector<8xf32>
    %90 = vector.shape_cast %89 : vector<8xf32> to vector<8x1xf32>
    %cst_49 = arith.constant 3.125000e-02 : f32
    %91 = vector.broadcast %cst_49 : f32 to vector<8x1xf32>
    %92 = arith.mulf %90, %91 : vector<8x1xf32>
    %93 = vector.broadcast %92 : vector<8x1xf32> to vector<8x128xf32>
    %94 = arith.subf %86, %93 : vector<8x128xf32>
    %95 = tpu.iota {dimensions = array<i32: 1>} : vector<8x128xi32>
    %c32_i32_50 = arith.constant 32 : i32
    %96 = vector.broadcast %c32_i32_50 : i32 to vector<8x128xi32>
    %97 = arith.cmpi slt, %95, %96 : vector<8x128xi32>
    %cst_51 = arith.constant 0.000000e+00 : f32
    %98 = vector.broadcast %cst_51 : f32 to vector<8x128xf32>
    %99 = arith.select %97, %94, %98 : vector<8x128xi1>, vector<8x128xf32>
    %100 = arith.mulf %99, %99 : vector<8x128xf32>
    %cst_52 = arith.constant dense<0.000000e+00> : vector<8xf32>
    %101 = vector.multi_reduction <add>, %100, %cst_52 [1] : vector<8x128xf32> to vector<8xf32>
    %102 = vector.shape_cast %101 : vector<8xf32> to vector<8x1xf32>
    %cst_53 = arith.constant 3.125000e-02 : f32
    %103 = vector.broadcast %cst_53 : f32 to vector<8x1xf32>
    %104 = arith.mulf %102, %103 : vector<8x1xf32>
    %cst_54 = arith.constant 9.99999974E-6 : f32
    %105 = vector.broadcast %cst_54 : f32 to vector<8x1xf32>
    %106 = arith.addf %104, %105 : vector<8x1xf32>
    %107 = math.rsqrt %106 : vector<8x1xf32>
    %108 = vector.broadcast %107 : vector<8x1xf32> to vector<8x128xf32>
    %109 = arith.mulf %99, %108 : vector<8x128xf32>
    %110 = vector.broadcast %87 : vector<1x128xf32> to vector<8x128xf32>
    %111 = arith.mulf %109, %110 : vector<8x128xf32>
    %112 = vector.broadcast %88 : vector<1x128xf32> to vector<8x128xf32>
    %113 = arith.addf %111, %112 : vector<8x128xf32>
    %cst_55 = arith.constant 0.000000e+00 : f32
    %114 = vector.broadcast %cst_55 : f32 to vector<8x128xf32>
    %115 = arith.maximumf %113, %114 : vector<8x128xf32>
    %c0_56 = arith.constant 0 : index
    %c0_57 = arith.constant 0 : index
    %116 = vector.load %arg11[%c0_56, %c0_57] : memref<128x128xf32, #tpu.memory_space<vmem>>, vector<128x128xf32>
    %cst_58 = arith.constant dense<0.000000e+00> : vector<8x128xf32>
    %117 = tpu.matmul %115, %116, %cst_58 {dimension_numbers = #tpu.dot_dimension_numbers<[1], [0], [0], [1], [0, 0, 1, 1], [], []>} : vector<8x128xf32>, vector<128x128xf32>, vector<8x128xf32> -> vector<8x128xf32>
    %c0_59 = arith.constant 0 : index
    %c0_60 = arith.constant 0 : index
    %118 = vector.load %arg12[%c0_59, %c0_60] : memref<3x128xf32, #tpu.memory_space<vmem>>, vector<1x128xf32>
    %119 = vector.broadcast %118 : vector<1x128xf32> to vector<8x128xf32>
    %120 = arith.addf %117, %119 : vector<8x128xf32>
    %c1_61 = arith.constant 1 : index
    %c0_62 = arith.constant 0 : index
    %121 = vector.load %arg12[%c1_61, %c0_62] : memref<3x128xf32, #tpu.memory_space<vmem>>, vector<1x128xf32>
    %c2_63 = arith.constant 2 : index
    %c0_64 = arith.constant 0 : index
    %122 = vector.load %arg12[%c2_63, %c0_64] : memref<3x128xf32, #tpu.memory_space<vmem>>, vector<1x128xf32>
    %cst_65 = arith.constant dense<0.000000e+00> : vector<8xf32>
    %123 = vector.multi_reduction <add>, %120, %cst_65 [1] : vector<8x128xf32> to vector<8xf32>
    %124 = vector.shape_cast %123 : vector<8xf32> to vector<8x1xf32>
    %cst_66 = arith.constant 1.562500e-02 : f32
    %125 = vector.broadcast %cst_66 : f32 to vector<8x1xf32>
    %126 = arith.mulf %124, %125 : vector<8x1xf32>
    %127 = vector.broadcast %126 : vector<8x1xf32> to vector<8x128xf32>
    %128 = arith.subf %120, %127 : vector<8x128xf32>
    %129 = tpu.iota {dimensions = array<i32: 1>} : vector<8x128xi32>
    %c64_i32_67 = arith.constant 64 : i32
    %130 = vector.broadcast %c64_i32_67 : i32 to vector<8x128xi32>
    %131 = arith.cmpi slt, %129, %130 : vector<8x128xi32>
    %cst_68 = arith.constant 0.000000e+00 : f32
    %132 = vector.broadcast %cst_68 : f32 to vector<8x128xf32>
    %133 = arith.select %131, %128, %132 : vector<8x128xi1>, vector<8x128xf32>
    %134 = arith.mulf %133, %133 : vector<8x128xf32>
    %cst_69 = arith.constant dense<0.000000e+00> : vector<8xf32>
    %135 = vector.multi_reduction <add>, %134, %cst_69 [1] : vector<8x128xf32> to vector<8xf32>
    %136 = vector.shape_cast %135 : vector<8xf32> to vector<8x1xf32>
    %cst_70 = arith.constant 1.562500e-02 : f32
    %137 = vector.broadcast %cst_70 : f32 to vector<8x1xf32>
    %138 = arith.mulf %136, %137 : vector<8x1xf32>
    %cst_71 = arith.constant 9.99999974E-6 : f32
    %139 = vector.broadcast %cst_71 : f32 to vector<8x1xf32>
    %140 = arith.addf %138, %139 : vector<8x1xf32>
    %141 = math.rsqrt %140 : vector<8x1xf32>
    %142 = vector.broadcast %141 : vector<8x1xf32> to vector<8x128xf32>
    %143 = arith.mulf %133, %142 : vector<8x128xf32>
    %144 = vector.broadcast %121 : vector<1x128xf32> to vector<8x128xf32>
    %145 = arith.mulf %143, %144 : vector<8x128xf32>
    %146 = vector.broadcast %122 : vector<1x128xf32> to vector<8x128xf32>
    %147 = arith.addf %145, %146 : vector<8x128xf32>
    %cst_72 = arith.constant 0.000000e+00 : f32
    %148 = vector.broadcast %cst_72 : f32 to vector<8x128xf32>
    %149 = arith.maximumf %147, %148 : vector<8x128xf32>
    %c0_73 = arith.constant 0 : index
    %c0_74 = arith.constant 0 : index
    %150 = vector.load %arg13[%c0_73, %c0_74] : memref<128x128xf32, #tpu.memory_space<vmem>>, vector<128x128xf32>
    %c0_75 = arith.constant 0 : index
    %c0_76 = arith.constant 0 : index
    %151 = vector.load %arg14[%c0_75, %c0_76] : memref<1x128xf32, #tpu.memory_space<vmem>>, vector<1x128xf32>
    %cst_77 = arith.constant dense<0.000000e+00> : vector<8x128xf32>
    %152 = tpu.matmul %149, %150, %cst_77 {dimension_numbers = #tpu.dot_dimension_numbers<[1], [0], [0], [1], [0, 0, 1, 1], [], []>} : vector<8x128xf32>, vector<128x128xf32>, vector<8x128xf32> -> vector<8x128xf32>
    %153 = vector.broadcast %151 : vector<1x128xf32> to vector<8x128xf32>
    %154 = arith.addf %152, %153 : vector<8x128xf32>
    %155 = math.exp %154 : vector<8x128xf32>
    %cst_78 = arith.constant 1.000000e+00 : f32
    %156 = vector.broadcast %cst_78 : f32 to vector<8x128xf32>
    %157 = arith.addf %156, %155 : vector<8x128xf32>
    %c0_79 = arith.constant 0 : index
    %c0_80 = arith.constant 0 : index
    %158 = vector.load %arg16[%c0_79, %c0_80] : memref<8x128xf32, #tpu.memory_space<vmem>>, vector<8x128xf32>
    tpu.vector_store %arg16[%c0_79, %c0_80], %157 {strides = array<i32>} : memref<8x128xf32, #tpu.memory_space<vmem>>, vector<8x128xf32>,
    return
  }
  func.func @transform_0(%arg0: i32, %arg1: i32) -> (i32, i32) {
    %c0_i32 = arith.constant 0 : i32
    %c0_i32_0 = arith.constant 0 : i32
    return %arg0, %c0_i32 : i32, i32
  }
  func.func @transform_1(%arg0: i32, %arg1: i32) -> (i32, i32) {
    %c0_i32 = arith.constant 0 : i32
    %c0_i32_0 = arith.constant 0 : i32
    %c0_i32_1 = arith.constant 0 : i32
    return %c0_i32, %c0_i32_0 : i32, i32
  }
  func.func @transform_2(%arg0: i32, %arg1: i32) -> (i32, i32) {
    %c0_i32 = arith.constant 0 : i32
    %c0_i32_0 = arith.constant 0 : i32
    %c0_i32_1 = arith.constant 0 : i32
    return %c0_i32, %c0_i32_0 : i32, i32
  }
  func.func @transform_3(%arg0: i32, %arg1: i32) -> (i32, i32) {
    %c0_i32 = arith.constant 0 : i32
    %c0_i32_0 = arith.constant 0 : i32
    %c0_i32_1 = arith.constant 0 : i32
    return %c0_i32, %c0_i32_0 : i32, i32
  }
  func.func @transform_4(%arg0: i32, %arg1: i32) -> (i32, i32) {
    %c0_i32 = arith.constant 0 : i32
    %c0_i32_0 = arith.constant 0 : i32
    %c0_i32_1 = arith.constant 0 : i32
    return %c0_i32, %c0_i32_0 : i32, i32
  }
  func.func @transform_5(%arg0: i32, %arg1: i32) -> (i32, i32) {
    %c0_i32 = arith.constant 0 : i32
    %c0_i32_0 = arith.constant 0 : i32
    return %c0_i32, %arg1 : i32, i32
  }
  func.func @transform_6(%arg0: i32, %arg1: i32) -> (i32, i32) {
    %c0_i32 = arith.constant 0 : i32
    %c0_i32_0 = arith.constant 0 : i32
    return %c0_i32, %arg1 : i32, i32
  }
  func.func @transform_7(%arg0: i32, %arg1: i32) -> (i32, i32) {
    %c0_i32 = arith.constant 0 : i32
    %c0_i32_0 = arith.constant 0 : i32
    %c0_i32_1 = arith.constant 0 : i32
    return %c0_i32, %c0_i32_0 : i32, i32
  }
  func.func @transform_8(%arg0: i32, %arg1: i32) -> (i32, i32) {
    %c0_i32 = arith.constant 0 : i32
    %c0_i32_0 = arith.constant 0 : i32
    %c0_i32_1 = arith.constant 0 : i32
    return %c0_i32, %c0_i32_0 : i32, i32
  }
  func.func @transform_9(%arg0: i32, %arg1: i32) -> (i32, i32) {
    %c0_i32 = arith.constant 0 : i32
    %c0_i32_0 = arith.constant 0 : i32
    %c0_i32_1 = arith.constant 0 : i32
    return %c0_i32, %c0_i32_0 : i32, i32
  }
  func.func @transform_10(%arg0: i32, %arg1: i32) -> (i32, i32) {
    %c0_i32 = arith.constant 0 : i32
    %c0_i32_0 = arith.constant 0 : i32
    %c0_i32_1 = arith.constant 0 : i32
    return %c0_i32, %c0_i32_0 : i32, i32
  }
  func.func @transform_11(%arg0: i32, %arg1: i32) -> (i32, i32) {
    %c0_i32 = arith.constant 0 : i32
    %c0_i32_0 = arith.constant 0 : i32
    return %c0_i32, %arg1 : i32, i32
  }
  func.func @transform_12(%arg0: i32, %arg1: i32) -> (i32, i32) {
    %c0_i32 = arith.constant 0 : i32
    %c0_i32_0 = arith.constant 0 : i32
    return %c0_i32, %arg1 : i32, i32
  }
  func.func @transform_13(%arg0: i32, %arg1: i32) -> (i32, i32) {
    %c0_i32 = arith.constant 0 : i32
    return %arg0, %arg1 : i32, i32
  }
  func.func @transform_14(%arg0: i32, %arg1: i32) -> (i32, i32) {
    %c0_i32 = arith.constant 0 : i32
    return %arg0, %arg1 : i32, i32
  }
}

</mosaic_0001>

<llo_original>
// kernel: tpu_custom_call.1
$region0: #{tpu_custom_call.1}
  #allocation0 [shape = 'u32[]', space=smem, size = 0x4, offset = 0x4, fixed_abs, tag = 'smem constant byte address 0x4 - core index']
  #allocation1 [shape = 'u32[72,128]{1,0:T(1,128)}', space=vmem, size = 0x9000, scoped, tag = 'internal scratch']
  %s0 = inlined_call_operand.hbm [shape: f32[8,24], index: 0, kind: input, shape index: {}]
  %s1 = inlined_call_operand.hbm [shape: f32[24,128], index: 1, kind: input, shape index: {}]
  %s2 = inlined_call_operand.hbm [shape: f32[3,128], index: 2, kind: input, shape index: {}]
  %s3 = inlined_call_operand.hbm [shape: f32[128,128], index: 3, kind: input, shape index: {}]
  %s4 = inlined_call_operand.hbm [shape: f32[3,128], index: 4, kind: input, shape index: {}]
  %s5 = inlined_call_operand.hbm [shape: f32[128,128], index: 5, kind: input, shape index: {}]
  %s6 = inlined_call_operand.hbm [shape: f32[1,128], index: 6, kind: input, shape index: {}]
  %s7 = inlined_call_operand.hbm [shape: f32[24,128], index: 7, kind: input, shape index: {}]
  %s8 = inlined_call_operand.vmem [shape: f32[3,128], index: 8, kind: input, shape index: {}]
  %s9 = inlined_call_operand.hbm [shape: f32[128,128], index: 9, kind: input, shape index: {}]
  %s10 = inlined_call_operand.vmem [shape: f32[3,128], index: 10, kind: input, shape index: {}]
  %s11 = inlined_call_operand.hbm [shape: f32[128,128], index: 11, kind: input, shape index: {}]
  %s12 = inlined_call_operand.vmem [shape: f32[1,128], index: 12, kind: input, shape index: {}]
  %s13 = inlined_call_operand.hbm [shape: f32[8,128], index: 13, kind: output, shape index: {0}]
  %s14 = inlined_call_operand.hbm [shape: f32[8,128], index: 14, kind: output, shape index: {1}]
  %15 = xla_tuple %s13, %s14
  %s16 = sld [smem:[#allocation0]]
  $region110: #{tpu_custom_call.1} parent=0
    _
  %s18 = ssub.s32 1, %s16
  %s19 = scalar_select 0, %s18, %s16
  $region1: #{tpu_custom_call.1} parent=0
    #allocation2 [shape = 'u8[4096]{0}', space=vmem, size = 0x1000, scoped, tag = 'input window, operand 0, single buffered']
    #allocation3 [shape = 's32[1]{0}', space=sflag, size = 0x4, scoped, tag = 'scoped memory for tpu_custom_call.1']
    #allocation4 [shape = 's32[1]{0}', space=sflag, size = 0x4, scoped, tag = 'scoped memory for tpu_custom_call.1']
    #allocation5 [shape = 'u8[12288]{0}', space=vmem, size = 0x3000, scoped, tag = 'input window, operand 1, single buffered']
    #allocation6 [shape = 's32[1]{0}', space=sflag, size = 0x4, scoped, tag = 'scoped memory for tpu_custom_call.1']
    #allocation7 [shape = 'u8[2048]{0}', space=vmem, size = 0x800, scoped, tag = 'input window, operand 2, single buffered']
    #allocation8 [shape = 'u8[65536]{0}', space=vmem, size = 0x10000, scoped, tag = 'input window, operand 3, single buffered']
    #allocation9 [shape = 's32[1]{0}', space=sflag, size = 0x4, scoped, tag = 'scoped memory for tpu_custom_call.1']
    #allocation10 [shape = 'u8[2048]{0}', space=vmem, size = 0x800, scoped, tag = 'input window, operand 4, single buffered']
    #allocation11 [shape = 'u8[65536]{0}', space=vmem, size = 0x10000, scoped, tag = 'input window, operand 5, single buffered']
    #allocation12 [shape = 's32[1]{0}', space=sflag, size = 0x4, scoped, tag = 'scoped memory for tpu_custom_call.1']
    #allocation13 [shape = 'u8[512]{0}', space=vmem, size = 0x400, scoped, tag = 'input window, operand 6, single buffered']
    #allocation14 [shape = 'u8[12288]{0}', space=vmem, size = 0x3000, scoped, tag = 'input window, operand 7, single buffered']
    #allocation15 [shape = 's32[1]{0}', space=sflag, size = 0x4, scoped, tag = 'scoped memory for tpu_custom_call.1']
    #allocation16 [shape = 'u8[65536]{0}', space=vmem, size = 0x10000, scoped, tag = 'input window, operand 9, single buffered']
    #allocation17 [shape = 'u8[65536]{0}', space=vmem, size = 0x10000, scoped, tag = 'input window, operand 11, single buffered']
    #allocation18 [shape = 's32[1]{0}', space=sflag, size = 0x4, scoped, tag = 'scoped memory for tpu_custom_call.1']
    #allocation19 [shape = 'u8[4096]{0}', space=vmem, size = 0x1000, scoped, tag = 'output window, operand 0, single buffered']
    #allocation20 [shape = 'u8[4096]{0}', space=vmem, size = 0x1000, scoped, tag = 'output window, operand 1, single buffered']
    #allocation21 [shape = 's32[1]{0}', space=sflag, size = 0x4, scoped, tag = 'scoped memory for tpu_custom_call.1']
    %20 = vsyncpa [#allocation3], 0
    %21 = vsyncpa [#allocation6], 0
    %22 = vsyncpa [#allocation9], 0
    %23 = vsyncpa [#allocation12], 0
    %24 = vsyncpa [#allocation15], 0
    %25 = vsyncpa [#allocation18], 0
    %26 = vsyncpa [#allocation4], 0
    %27 = vsyncpa [#allocation21], 0
    // Predicated region
    $region2: #{tpu_custom_call.1} parent=1 // pred_check
      _
    $region3: #{tpu_custom_call.1} parent=1 // pred_check_branch
      %29 = sbr.rel (0) target = $region5
    $region4: #{tpu_custom_call.1} parent=1 // pred_region
      %31 = vsyncadd [#allocation3], 0
      %s33 = sshll.u32 %s0, 4
      %s34 = int_to_ptr.hbm [resolvable:$true] %s33
      %s35 = sshll.u32 [#allocation2], 4
      %s36 = int_to_ptr.vmem [resolvable:$true] %s35
      %38 = dma.hbm_to_vmem [thread:$0]  %s34, 128, %s36, [#allocation3]
    $region5: #{tpu_custom_call.1} parent=1 // pred_fallthru
      _
    // Predicated region
    $region6: #{tpu_custom_call.1} parent=1 // pred_check
      _
    $region7: #{tpu_custom_call.1} parent=1 // pred_check_branch
      %40 = sbr.rel (0) target = $region9
    $region8: #{tpu_custom_call.1} parent=1 // pred_region
      %42 = vsyncadd [#allocation6], 0
      %s43 = sshll.u32 %s1, 4
      %s44 = int_to_ptr.hbm [resolvable:$true] %s43
      %s45 = sshll.u32 [#allocation5], 4
      %s46 = int_to_ptr.vmem [resolvable:$true] %s45
      %51 = dma.hbm_to_vmem [thread:$0]  %s44, 384, %s46, [#allocation6], 128, 128, 8
    $region9: #{tpu_custom_call.1} parent=1 // pred_fallthru
      _
    // Predicated region
    $region10: #{tpu_custom_call.1} parent=1 // pred_check
      _
    $region11: #{tpu_custom_call.1} parent=1 // pred_check_branch
      %53 = sbr.rel (0) target = $region13
    $region12: #{tpu_custom_call.1} parent=1 // pred_region
      %55 = vsyncadd [#allocation6], 0
      %s57 = sshll.u32 %s2, 4
      %s58 = int_to_ptr.hbm [resolvable:$true] %s57
      %s59 = sshll.u32 [#allocation7], 4
      %s60 = int_to_ptr.vmem [resolvable:$true] %s59
      %62 = dma.hbm_to_vmem [thread:$0]  %s58, 64, %s60, [#allocation6]
    $region13: #{tpu_custom_call.1} parent=1 // pred_fallthru
      _
    // Predicated region
    $region14: #{tpu_custom_call.1} parent=1 // pred_check
      _
    $region15: #{tpu_custom_call.1} parent=1 // pred_check_branch
      %64 = sbr.rel (0) target = $region17
    $region16: #{tpu_custom_call.1} parent=1 // pred_region
      %66 = vsyncadd [#allocation9], 0
      %s67 = sshll.u32 %s3, 4
      %s68 = int_to_ptr.hbm [resolvable:$true] %s67
      %s69 = sshll.u32 [#allocation8], 4
      %s70 = int_to_ptr.vmem [resolvable:$true] %s69
      %75 = dma.hbm_to_vmem [thread:$0]  %s68, 2048, %s70, [#allocation9], 128, 128, 8
    $region17: #{tpu_custom_call.1} parent=1 // pred_fallthru
      _
    // Predicated region
    $region18: #{tpu_custom_call.1} parent=1 // pred_check
      _
    $region19: #{tpu_custom_call.1} parent=1 // pred_check_branch
      %77 = sbr.rel (0) target = $region21
    $region20: #{tpu_custom_call.1} parent=1 // pred_region
      %79 = vsyncadd [#allocation9], 0
      %s81 = sshll.u32 %s4, 4
      %s82 = int_to_ptr.hbm [resolvable:$true] %s81
      %s83 = sshll.u32 [#allocation10], 4
      %s84 = int_to_ptr.vmem [resolvable:$true] %s83
      %86 = dma.hbm_to_vmem [thread:$0]  %s82, 64, %s84, [#allocation9]
    $region21: #{tpu_custom_call.1} parent=1 // pred_fallthru
      _
    // Predicated region
    $region22: #{tpu_custom_call.1} parent=1 // pred_check
      _
    $region23: #{tpu_custom_call.1} parent=1 // pred_check_branch
      %88 = sbr.rel (0) target = $region25
    $region24: #{tpu_custom_call.1} parent=1 // pred_region
      %90 = vsyncadd [#allocation12], 0
      %s91 = sshll.u32 %s5, 4
      %s92 = int_to_ptr.hbm [resolvable:$true] %s91
      %s93 = sshll.u32 [#allocation11], 4
      %s94 = int_to_ptr.vmem [resolvable:$true] %s93
      %99 = dma.hbm_to_vmem [thread:$0]  %s92, 2048, %s94, [#allocation12], 128, 128, 8
    $region25: #{tpu_custom_call.1} parent=1 // pred_fallthru
      _
    // Predicated region
    $region26: #{tpu_custom_call.1} parent=1 // pred_check
      _
    $region27: #{tpu_custom_call.1} parent=1 // pred_check_branch
      %101 = sbr.rel (0) target = $region29
    $region28: #{tpu_custom_call.1} parent=1 // pred_region
      %103 = vsyncadd [#allocation12], 0
      %s105 = sshll.u32 %s6, 4
      %s106 = int_to_ptr.hbm [resolvable:$true] %s105
      %s107 = sshll.u32 [#allocation13], 4
      %s108 = int_to_ptr.vmem [resolvable:$true] %s107
      %110 = dma.hbm_to_vmem [thread:$0]  %s106, 16, %s108, [#allocation12]
    $region29: #{tpu_custom_call.1} parent=1 // pred_fallthru
      _
    // Predicated region
    $region30: #{tpu_custom_call.1} parent=1 // pred_check
      _
    $region31: #{tpu_custom_call.1} parent=1 // pred_check_branch
      %112 = sbr.rel (0) target = $region33
    $region32: #{tpu_custom_call.1} parent=1 // pred_region
      %114 = vsyncadd [#allocation15], 0
      %s115 = sshll.u32 %s7, 4
      %s116 = int_to_ptr.hbm [resolvable:$true] %s115
      %s117 = sshll.u32 [#allocation14], 4
      %s118 = int_to_ptr.vmem [resolvable:$true] %s117
      %123 = dma.hbm_to_vmem [thread:$0]  %s116, 384, %s118, [#allocation15], 128, 128, 8
    $region33: #{tpu_custom_call.1} parent=1 // pred_fallthru
      _
    // Predicated region
    $region34: #{tpu_custom_call.1} parent=1 // pred_check
      _
    $region35: #{tpu_custom_call.1} parent=1 // pred_check_branch
      %125 = sbr.rel (0) target = $region37
    $region36: #{tpu_custom_call.1} parent=1 // pred_region
      _
    $region37: #{tpu_custom_call.1} parent=1 // pred_fallthru
      _
    // Predicated region
    $region38: #{tpu_custom_call.1} parent=1 // pred_check
      _
    $region39: #{tpu_custom_call.1} parent=1 // pred_check_branch
      %127 = sbr.rel (0) target = $region41
    $region40: #{tpu_custom_call.1} parent=1 // pred_region
      %129 = vsyncadd [#allocation15], 0
      %s130 = sshll.u32 %s9, 4
      %s131 = int_to_ptr.hbm [resolvable:$true] %s130
      %s132 = sshll.u32 [#allocation16], 4
      %s133 = int_to_ptr.vmem [resolvable:$true] %s132
      %138 = dma.hbm_to_vmem [thread:$0]  %s131, 2048, %s133, [#allocation15], 128, 128, 8
    $region41: #{tpu_custom_call.1} parent=1 // pred_fallthru
      _
    // Predicated region
    $region42: #{tpu_custom_call.1} parent=1 // pred_check
      _
    $region43: #{tpu_custom_call.1} parent=1 // pred_check_branch
      %140 = sbr.rel (0) target = $region45
    $region44: #{tpu_custom_call.1} parent=1 // pred_region
      _
    $region45: #{tpu_custom_call.1} parent=1 // pred_fallthru
      _
    // Predicated region
    $region46: #{tpu_custom_call.1} parent=1 // pred_check
      _
    $region47: #{tpu_custom_call.1} parent=1 // pred_check_branch
      %142 = sbr.rel (0) target = $region49
    $region48: #{tpu_custom_call.1} parent=1 // pred_region
      %144 = vsyncadd [#allocation18], 0
      %s145 = sshll.u32 %s11, 4
      %s146 = int_to_ptr.hbm [resolvable:$true] %s145
      %s147 = sshll.u32 [#allocation17], 4
      %s148 = int_to_ptr.vmem [resolvable:$true] %s147
      %153 = dma.hbm_to_vmem [thread:$0]  %s146, 2048, %s148, [#allocation18], 128, 128, 8
    $region49: #{tpu_custom_call.1} parent=1 // pred_fallthru
      _
    // Predicated region
    $region50: #{tpu_custom_call.1} parent=1 // pred_check
      _
    $region51: #{tpu_custom_call.1} parent=1 // pred_check_branch
      %155 = sbr.rel (0) target = $region53
    $region52: #{tpu_custom_call.1} parent=1 // pred_region
      _
    $region53: #{tpu_custom_call.1} parent=1 // pred_fallthru
      _
    // Predicated region
    $region54: #{tpu_custom_call.1} parent=1 // pred_check
      _
    $region55: #{tpu_custom_call.1} parent=1 // pred_check_branch
      %157 = sbr.rel (0) target = $region57
    $region56: #{tpu_custom_call.1} parent=1 // pred_region
      %159 = dma.done [#allocation3], 128
    $region57: #{tpu_custom_call.1} parent=1 // pred_fallthru
      _
    // Predicated region
    $region58: #{tpu_custom_call.1} parent=1 // pred_check
      _
    $region59: #{tpu_custom_call.1} parent=1 // pred_check_branch
      %161 = sbr.rel (0) target = $region61
    $region60: #{tpu_custom_call.1} parent=1 // pred_region
      %163 = dma.done [#allocation6], 384
    $region61: #{tpu_custom_call.1} parent=1 // pred_fallthru
      _
    // Predicated region
    $region62: #{tpu_custom_call.1} parent=1 // pred_check
      _
    $region63: #{tpu_custom_call.1} parent=1 // pred_check_branch
      %165 = sbr.rel (0) target = $region65
    $region64: #{tpu_custom_call.1} parent=1 // pred_region
      %167 = dma.done [#allocation6], 64
    $region65: #{tpu_custom_call.1} parent=1 // pred_fallthru
      _
    // Predicated region
    $region66: #{tpu_custom_call.1} parent=1 // pred_check
      _
    $region67: #{tpu_custom_call.1} parent=1 // pred_check_branch
      %169 = sbr.rel (0) target = $region69
    $region68: #{tpu_custom_call.1} parent=1 // pred_region
      %171 = dma.done [#allocation9], 2048
    $region69: #{tpu_custom_call.1} parent=1 // pred_fallthru
      _
    // Predicated region
    $region70: #{tpu_custom_call.1} parent=1 // pred_check
      _
    $region71: #{tpu_custom_call.1} parent=1 // pred_check_branch
      %173 = sbr.rel (0) target = $region73
    $region72: #{tpu_custom_call.1} parent=1 // pred_region
      %175 = dma.done [#allocation9], 64
    $region73: #{tpu_custom_call.1} parent=1 // pred_fallthru
      _
    // Predicated region
    $region74: #{tpu_custom_call.1} parent=1 // pred_check
      _
    $region75: #{tpu_custom_call.1} parent=1 // pred_check_branch
      %177 = sbr.rel (0) target = $region77
    $region76: #{tpu_custom_call.1} parent=1 // pred_region
      %179 = dma.done [#allocation12], 2048
    $region77: #{tpu_custom_call.1} parent=1 // pred_fallthru
      _
    // Predicated region
    $region78: #{tpu_custom_call.1} parent=1 // pred_check
      _
    $region79: #{tpu_custom_call.1} parent=1 // pred_check_branch
      %181 = sbr.rel (0) target = $region81
    $region80: #{tpu_custom_call.1} parent=1 // pred_region
      %183 = dma.done [#allocation12], 16
    $region81: #{tpu_custom_call.1} parent=1 // pred_fallthru
      _
    // Predicated region
    $region82: #{tpu_custom_call.1} parent=1 // pred_check
      _
    $region83: #{tpu_custom_call.1} parent=1 // pred_check_branch
      %185 = sbr.rel (0) target = $region85
    $region84: #{tpu_custom_call.1} parent=1 // pred_region
      %187 = dma.done [#allocation15], 384
    $region85: #{tpu_custom_call.1} parent=1 // pred_fallthru
      _
    // Predicated region
    $region86: #{tpu_custom_call.1} parent=1 // pred_check
      _
    $region87: #{tpu_custom_call.1} parent=1 // pred_check_branch
      %189 = sbr.rel (0) target = $region89
    $region88: #{tpu_custom_call.1} parent=1 // pred_region
      %191 = dma.done [#allocation15], 2048
    $region89: #{tpu_custom_call.1} parent=1 // pred_fallthru
      _
    // Predicated region
    $region90: #{tpu_custom_call.1} parent=1 // pred_check
      _
    $region91: #{tpu_custom_call.1} parent=1 // pred_check_branch
      %193 = sbr.rel (0) target = $region93
    $region92: #{tpu_custom_call.1} parent=1 // pred_region
      %195 = dma.done [#allocation18], 2048
    $region93: #{tpu_custom_call.1} parent=1 // pred_fallthru
      _
    %v196 = vld [vmem:[#allocation2] sm:$0xff]
    %v197 = vld [vmem:[#allocation5] sm:$0xff]
    %v198 = vld [vmem:[#allocation5 + $0x8] sm:$0xff]
    %v199 = vld [vmem:[#allocation5 + $0x10] sm:$0xff]
    %v200 = vld [vmem:[#allocation7] sm:$0x1]
    %v201 = vperm.slane %v200, 0
    %vm202 = vcmask 195584
    %v204 = vsel %vm202, %v196, 0
    %206 = vmatpush.msra.mxu0 0.0
    %207 = vmatpush.msra.mxu0 0.0
    %208 = vmatpush.msra.mxu0 0.0
    %209 = vmatpush.msra.mxu0 0.0
    %210 = vmatpush.msra.mxu0 0.0
    %211 = vmatpush.msra.mxu0 0.0
    %212 = vmatpush.msra.mxu0 0.0
    %213 = vmatpush.msra.mxu0 0.0
    %214 = vmatpush.msra.mxu0 0.0
    %215 = vmatpush.msra.mxu0 0.0
    %216 = vmatpush.msra.mxu0 0.0
    %217 = vmatpush.msra.mxu0 0.0
    %218 = vmatpush.msra.mxu0 0.0
    %219 = vmatpush.msra.mxu0 %v199
    %220 = vmatpush.msra.mxu0 %v198
    %221 = vmatpush.msra.mxu0 %v197
    %222 = vmatmul.f32.gmra.mxu0 %v204
    %v223 = vpop.f32.mrf.mxu0
    %v224 = vadd.f32 %v201, %v223
    %225 = vdwg.mxu0
    %v226 = vld [vmem:[#allocation7 + $0x1] sm:$0x1]
    %v227 = vld [vmem:[#allocation7 + $0x2] sm:$0x1]
    %228 = vadd.xlane.f32.xlu0 %v224
    %v229 = vpop.xlane.xlu0 %228
    %v230 = vmul.f32 %v229, 0.03125
    %v231 = vsub.f32 %v224, %v230
    %v232 = vlaneseq
    %v233 = vand.u32 %v232, 127
    %vm234 = vcmp.lt.s32.totalorder %v233, 32
    %v235 = vsel %vm234, %v231, 0.0
    %v236 = vmul.f32 %v235, %v235
    %237 = vadd.xlane.f32.xlu0 %v236
    %v238 = vpop.xlane.xlu0 %237
    %v239 = vmul.f32 %v238, 0.03125
    %v240 = vadd.f32 %v239, 1e-05
    %v241 = vrsqrt.pop %v240
    %v242 = vmul.f32 %v241, %v240
    %v243 = vmul.f32 %v242, %v241
    %v244 = vmul.f32 0.5, %v243
    %v245 = vsub.f32 1.5, %v244
    %v246 = vmul.f32 %v241, %v245
    %vm247 = vweird.f32 %v240
    %vm248 = vweird.f32 %v241
    %vm249 = vmor %vm247, %vm248
    %v250 = vsel %vm249, %v241, %v246
    %v251 = vmul.f32 %v235, %v250
    %v252 = vperm.slane %v226, 0
    %v253 = vmul.f32 %v251, %v252
    %v254 = vperm.slane %v227, 0
    %v255 = vadd.f32 %v253, %v254
    %v256 = vmax.f32 %v255, 0.0
    %v257 = vld [vmem:[#allocation8] sm:$0xff]
    %v258 = vld [vmem:[#allocation8 + $0x8] sm:$0xff]
    %v259 = vld [vmem:[#allocation8 + $0x10] sm:$0xff]
    %v260 = vld [vmem:[#allocation8 + $0x18] sm:$0xff]
    %v261 = vld [vmem:[#allocation8 + $0x20] sm:$0xff]
    %v262 = vld [vmem:[#allocation8 + $0x28] sm:$0xff]
    %v263 = vld [vmem:[#allocation8 + $0x30] sm:$0xff]
    %v264 = vld [vmem:[#allocation8 + $0x38] sm:$0xff]
    %v265 = vld [vmem:[#allocation8 + $0x40] sm:$0xff]
    %v266 = vld [vmem:[#allocation8 + $0x48] sm:$0xff]
    %v267 = vld [vmem:[#allocation8 + $0x50] sm:$0xff]
    %v268 = vld [vmem:[#allocation8 + $0x58] sm:$0xff]
    %v269 = vld [vmem:[#allocation8 + $0x60] sm:$0xff]
    %v270 = vld [vmem:[#allocation8 + $0x68] sm:$0xff]
    %v271 = vld [vmem:[#allocation8 + $0x70] sm:$0xff]
    %v272 = vld [vmem:[#allocation8 + $0x78] sm:$0xff]
    %v273 = vld [vmem:[#allocation10] sm:$0x1]
    %v274 = vperm.slane %v273, 0
    %275 = vmatpush.msra.mxu0 %v272
    %276 = vmatpush.msra.mxu0 %v271
    %277 = vmatpush.msra.mxu0 %v270
    %278 = vmatpush.msra.mxu0 %v269
    %279 = vmatpush.msra.mxu0 %v268
    %280 = vmatpush.msra.mxu0 %v267
    %281 = vmatpush.msra.mxu0 %v266
    %282 = vmatpush.msra.mxu0 %v265
    %283 = vmatpush.msra.mxu0 %v264
    %284 = vmatpush.msra.mxu0 %v263
    %285 = vmatpush.msra.mxu0 %v262
    %286 = vmatpush.msra.mxu0 %v261
    %287 = vmatpush.msra.mxu0 %v260
    %288 = vmatpush.msra.mxu0 %v259
    %289 = vmatpush.msra.mxu0 %v258
    %290 = vmatpush.msra.mxu0 %v257
    %291 = vmatmul.f32.gmra.mxu0 %v256
    %v292 = vpop.f32.mrf.mxu0
    %v293 = vadd.f32 %v274, %v292
    %294 = vdwg.mxu0
    %v295 = vld [vmem:[#allocation10 + $0x1] sm:$0x1]
    %v296 = vld [vmem:[#allocation10 + $0x2] sm:$0x1]
    %297 = vadd.xlane.f32.xlu0 %v293
    %v298 = vpop.xlane.xlu0 %297
    %v299 = vmul.f32 %v298, 0.015625
    %v300 = vsub.f32 %v293, %v299
    %vm301 = vcmp.lt.s32.totalorder %v233, 64
    %v302 = vsel %vm301, %v300, 0.0
    %v303 = vmul.f32 %v302, %v302
    %304 = vadd.xlane.f32.xlu0 %v303
    %v305 = vpop.xlane.xlu0 %304
    %v306 = vmul.f32 %v305, 0.015625
    %v307 = vadd.f32 %v306, 1e-05
    %v308 = vrsqrt.pop %v307
    %v309 = vmul.f32 %v308, %v307
    %v310 = vmul.f32 %v309, %v308
    %v311 = vmul.f32 0.5, %v310
    %v312 = vsub.f32 1.5, %v311
    %v313 = vmul.f32 %v308, %v312
    %vm314 = vweird.f32 %v307
    %vm315 = vweird.f32 %v308
    %vm316 = vmor %vm314, %vm315
    %v317 = vsel %vm316, %v308, %v313
    %v318 = vmul.f32 %v302, %v317
    %v319 = vperm.slane %v295, 0
    %v320 = vmul.f32 %v318, %v319
    %v321 = vperm.slane %v296, 0
    %v322 = vadd.f32 %v320, %v321
    %v323 = vmax.f32 %v322, 0.0
    %v324 = vld [vmem:[#allocation11] sm:$0xff]
    %v325 = vld [vmem:[#allocation11 + $0x8] sm:$0xff]
    %v326 = vld [vmem:[#allocation11 + $0x10] sm:$0xff]
    %v327 = vld [vmem:[#allocation11 + $0x18] sm:$0xff]
    %v328 = vld [vmem:[#allocation11 + $0x20] sm:$0xff]
    %v329 = vld [vmem:[#allocation11 + $0x28] sm:$0xff]
    %v330 = vld [vmem:[#allocation11 + $0x30] sm:$0xff]
    %v331 = vld [vmem:[#allocation11 + $0x38] sm:$0xff]
    %v332 = vld [vmem:[#allocation11 + $0x40] sm:$0xff]
    %v333 = vld [vmem:[#allocation11 + $0x48] sm:$0xff]
    %v334 = vld [vmem:[#allocation11 + $0x50] sm:$0xff]
    %v335 = vld [vmem:[#allocation11 + $0x58] sm:$0xff]
    %v336 = vld [vmem:[#allocation11 + $0x60] sm:$0xff]
    %v337 = vld [vmem:[#allocation11 + $0x68] sm:$0xff]
    %v338 = vld [vmem:[#allocation11 + $0x70] sm:$0xff]
    %v339 = vld [vmem:[#allocation11 + $0x78] sm:$0xff]
    %v340 = vld [vmem:[#allocation13] sm:$0x1]
    %v342 = vperm.slane %v340, 0
    %344 = vmatpush.msra.mxu0 %v339
    %345 = vmatpush.msra.mxu0 %v338
    %346 = vmatpush.msra.mxu0 %v337
    %347 = vmatpush.msra.mxu0 %v336
    %348 = vmatpush.msra.mxu0 %v335
    %349 = vmatpush.msra.mxu0 %v334
    %350 = vmatpush.msra.mxu0 %v333
    %351 = vmatpush.msra.mxu0 %v332
    %352 = vmatpush.msra.mxu0 %v331
    %353 = vmatpush.msra.mxu0 %v330
    %354 = vmatpush.msra.mxu0 %v329
    %355 = vmatpush.msra.mxu0 %v328
    %356 = vmatpush.msra.mxu0 %v327
    %357 = vmatpush.msra.mxu0 %v326
    %358 = vmatpush.msra.mxu0 %v325
    %359 = vmatpush.msra.mxu0 %v324
    %360 = vmatmul.f32.gmra.mxu0 %v323
    %v361 = vpop.f32.mrf.mxu0
    %v362 = vadd.f32 %v342, %v361
    %363 = vdwg.mxu0
    %vm364 = vcmp.gt.f32.partialorder %v362, 20.0
    %v365 = vmin.f32 %v362, 20.0
    %v366 = vmul.f32 %v365, 1.442695
    %v367 = vpow.pop %v366
    %v368 = vadd.f32 %v367, 1.0
    %v369 = vlog2.pop %v368
    %v370 = vmul.f32 %v369, 0.6931472
    %v371 = vmul.f32 -0.5, %v367
    %v372 = vadd.f32 %v371, 1.0
    %v373 = vmul.f32 %v372, %v367
    %v374 = vand.u32 2147483647, %v367
    %vm375 = vcmp.lt.f32.partialorder %v374, 0.0004427343
    %v376 = vsel %vm375, %v373, %v370
    %v377 = vsel %vm364, %v362, %v376
    %378 = vst [vmem:[#allocation19] sm:$0xff] %v377
    %v379 = vld [vmem:[#allocation14] sm:$0xff]
    %v380 = vld [vmem:[#allocation14 + $0x8] sm:$0xff]
    %v381 = vld [vmem:[#allocation14 + $0x10] sm:$0xff]
    %v382 = vld [vmem:[%s8] sm:$0x1]
    %v383 = vperm.slane %v382, 0
    %384 = vmatpush.msra.mxu0 0.0
    %385 = vmatpush.msra.mxu0 0.0
    %386 = vmatpush.msra.mxu0 0.0
    %387 = vmatpush.msra.mxu0 0.0
    %388 = vmatpush.msra.mxu0 0.0
    %389 = vmatpush.msra.mxu0 0.0
    %390 = vmatpush.msra.mxu0 0.0
    %391 = vmatpush.msra.mxu0 0.0
    %392 = vmatpush.msra.mxu0 0.0
    %393 = vmatpush.msra.mxu0 0.0
    %394 = vmatpush.msra.mxu0 0.0
    %395 = vmatpush.msra.mxu0 0.0
    %396 = vmatpush.msra.mxu0 0.0
    %397 = vmatpush.msra.mxu0 %v381
    %398 = vmatpush.msra.mxu0 %v380
    %399 = vmatpush.msra.mxu0 %v379
    %400 = vmatmul.f32.gmra.mxu0 %v204
    %v401 = vpop.f32.mrf.mxu0
    %v402 = vadd.f32 %v383, %v401
    %403 = vdwg.mxu0
    %v404 = vld [vmem:[%s8 + $0x1] sm:$0x1]
    %v405 = vld [vmem:[%s8 + $0x2] sm:$0x1]
    %406 = vadd.xlane.f32.xlu0 %v402
    %v407 = vpop.xlane.xlu0 %406
    %v408 = vmul.f32 %v407, 0.03125
    %v409 = vsub.f32 %v402, %v408
    %v410 = vsel %vm234, %v409, 0.0
    %v411 = vmul.f32 %v410, %v410
    %412 = vadd.xlane.f32.xlu0 %v411
    %v413 = vpop.xlane.xlu0 %412
    %v414 = vmul.f32 %v413, 0.03125
    %v415 = vadd.f32 %v414, 1e-05
    %v416 = vrsqrt.pop %v415
    %v417 = vmul.f32 %v416, %v415
    %v418 = vmul.f32 %v417, %v416
    %v419 = vmul.f32 0.5, %v418
    %v420 = vsub.f32 1.5, %v419
    %v421 = vmul.f32 %v416, %v420
    %vm422 = vweird.f32 %v415
    %vm423 = vweird.f32 %v416
    %vm424 = vmor %vm422, %vm423
    %v425 = vsel %vm424, %v416, %v421
    %v426 = vmul.f32 %v410, %v425
    %v427 = vperm.slane %v404, 0
    %v428 = vmul.f32 %v426, %v427
    %v429 = vperm.slane %v405, 0
    %v430 = vadd.f32 %v428, %v429
    %v431 = vmax.f32 %v430, 0.0
    %v432 = vld [vmem:[#allocation16] sm:$0xff]
    %v433 = vld [vmem:[#allocation16 + $0x8] sm:$0xff]
    %v434 = vld [vmem:[#allocation16 + $0x10] sm:$0xff]
    %v435 = vld [vmem:[#allocation16 + $0x18] sm:$0xff]
    %v436 = vld [vmem:[#allocation16 + $0x20] sm:$0xff]
    %v437 = vld [vmem:[#allocation16 + $0x28] sm:$0xff]
    %v438 = vld [vmem:[#allocation16 + $0x30] sm:$0xff]
    %v439 = vld [vmem:[#allocation16 + $0x38] sm:$0xff]
    %v440 = vld [vmem:[#allocation16 + $0x40] sm:$0xff]
    %v441 = vld [vmem:[#allocation16 + $0x48] sm:$0xff]
    %v442 = vld [vmem:[#allocation16 + $0x50] sm:$0xff]
    %v443 = vld [vmem:[#allocation16 + $0x58] sm:$0xff]
    %v444 = vld [vmem:[#allocation16 + $0x60] sm:$0xff]
    %v445 = vld [vmem:[#allocation16 + $0x68] sm:$0xff]
    %v446 = vld [vmem:[#allocation16 + $0x70] sm:$0xff]
    %v447 = vld [vmem:[#allocation16 + $0x78] sm:$0xff]
    %v448 = vld [vmem:[%s10] sm:$0x1]
    %v449 = vperm.slane %v448, 0
    %450 = vmatpush.msra.mxu0 %v447
    %451 = vmatpush.msra.mxu0 %v446
    %452 = vmatpush.msra.mxu0 %v445
    %453 = vmatpush.msra.mxu0 %v444
    %454 = vmatpush.msra.mxu0 %v443
    %455 = vmatpush.msra.mxu0 %v442
    %456 = vmatpush.msra.mxu0 %v441
    %457 = vmatpush.msra.mxu0 %v440
    %458 = vmatpush.msra.mxu0 %v439
    %459 = vmatpush.msra.mxu0 %v438
    %460 = vmatpush.msra.mxu0 %v437
    %461 = vmatpush.msra.mxu0 %v436
    %462 = vmatpush.msra.mxu0 %v435
    %463 = vmatpush.msra.mxu0 %v434
    %464 = vmatpush.msra.mxu0 %v433
    %465 = vmatpush.msra.mxu0 %v432
    %466 = vmatmul.f32.gmra.mxu0 %v431
    %v467 = vpop.f32.mrf.mxu0
    %v468 = vadd.f32 %v449, %v467
    %469 = vdwg.mxu0
    %v470 = vld [vmem:[%s10 + $0x1] sm:$0x1]
    %v471 = vld [vmem:[%s10 + $0x2] sm:$0x1]
    %472 = vadd.xlane.f32.xlu0 %v468
    %v473 = vpop.xlane.xlu0 %472
    %v474 = vmul.f32 %v473, 0.015625
    %v475 = vsub.f32 %v468, %v474
    %v476 = vsel %vm301, %v475, 0.0
    %v477 = vmul.f32 %v476, %v476
    %478 = vadd.xlane.f32.xlu0 %v477
    %v479 = vpop.xlane.xlu0 %478
    %v480 = vmul.f32 %v479, 0.015625
    %v481 = vadd.f32 %v480, 1e-05
    %v482 = vrsqrt.pop %v481
    %v483 = vmul.f32 %v482, %v481
    %v484 = vmul.f32 %v483, %v482
    %v485 = vmul.f32 0.5, %v484
    %v486 = vsub.f32 1.5, %v485
    %v487 = vmul.f32 %v482, %v486
    %vm488 = vweird.f32 %v481
    %vm489 = vweird.f32 %v482
    %vm490 = vmor %vm488, %vm489
    %v491 = vsel %vm490, %v482, %v487
    %v492 = vmul.f32 %v476, %v491
    %v493 = vperm.slane %v470, 0
    %v494 = vmul.f32 %v492, %v493
    %v495 = vperm.slane %v471, 0
    %v496 = vadd.f32 %v494, %v495
    %v497 = vmax.f32 %v496, 0.0
    %v498 = vld [vmem:[#allocation17] sm:$0xff]
    %v499 = vld [vmem:[#allocation17 + $0x8] sm:$0xff]
    %v500 = vld [vmem:[#allocation17 + $0x10] sm:$0xff]
    %v501 = vld [vmem:[#allocation17 + $0x18] sm:$0xff]
    %v502 = vld [vmem:[#allocation17 + $0x20] sm:$0xff]
    %v503 = vld [vmem:[#allocation17 + $0x28] sm:$0xff]
    %v504 = vld [vmem:[#allocation17 + $0x30] sm:$0xff]
    %v505 = vld [vmem:[#allocation17 + $0x38] sm:$0xff]
    %v506 = vld [vmem:[#allocation17 + $0x40] sm:$0xff]
    %v507 = vld [vmem:[#allocation17 + $0x48] sm:$0xff]
    %v508 = vld [vmem:[#allocation17 + $0x50] sm:$0xff]
    %v509 = vld [vmem:[#allocation17 + $0x58] sm:$0xff]
    %v510 = vld [vmem:[#allocation17 + $0x60] sm:$0xff]
    %v511 = vld [vmem:[#allocation17 + $0x68] sm:$0xff]
    %v512 = vld [vmem:[#allocation17 + $0x70] sm:$0xff]
    %v513 = vld [vmem:[#allocation17 + $0x78] sm:$0xff]
    %v514 = vld [vmem:[%s12] sm:$0x1]
    %v516 = vperm.slane %v514, 0
    %518 = vmatpush.msra.mxu0 %v513
    %519 = vmatpush.msra.mxu0 %v512
    %520 = vmatpush.msra.mxu0 %v511
    %521 = vmatpush.msra.mxu0 %v510
    %522 = vmatpush.msra.mxu0 %v509
    %523 = vmatpush.msra.mxu0 %v508
    %524 = vmatpush.msra.mxu0 %v507
    %525 = vmatpush.msra.mxu0 %v506
    %526 = vmatpush.msra.mxu0 %v505
    %527 = vmatpush.msra.mxu0 %v504
    %528 = vmatpush.msra.mxu0 %v503
    %529 = vmatpush.msra.mxu0 %v502
    %530 = vmatpush.msra.mxu0 %v501
    %531 = vmatpush.msra.mxu0 %v500
    %532 = vmatpush.msra.mxu0 %v499
    %533 = vmatpush.msra.mxu0 %v498
    %534 = vmatmul.f32.gmra.mxu0 %v497
    %v535 = vpop.f32.mrf.mxu0
    %v536 = vadd.f32 %v516, %v535
    %537 = vdwg.mxu0
    %v538 = vmul.f32 %v536, 1.442695
    %v539 = vpow.pop %v538
    %v540 = vadd.f32 %v539, 1.0
    %541 = vst [vmem:[#allocation20] sm:$0xff] %v540
    // Predicated region
    $region94: #{tpu_custom_call.1} parent=1 // pred_check
      _
    $region95: #{tpu_custom_call.1} parent=1 // pred_check_branch
      %543 = sbr.rel (0) target = $region97
    $region96: #{tpu_custom_call.1} parent=1 // pred_region
      %545 = vsyncadd [#allocation4], 0
      %s547 = sshll.u32 [#allocation19], 4
      %s548 = int_to_ptr.vmem [resolvable:$true] %s547
      %s549 = sshll.u32 %s13, 4
      %s550 = int_to_ptr.hbm [resolvable:$true] %s549
      %552 = dma.vmem_to_hbm [thread:$0]  %s548, 128, %s550, [#allocation4]
    $region97: #{tpu_custom_call.1} parent=1 // pred_fallthru
      _
    // Predicated region
    $region98: #{tpu_custom_call.1} parent=1 // pred_check
      _
    $region99: #{tpu_custom_call.1} parent=1 // pred_check_branch
      %554 = sbr.rel (0) target = $region101
    $region100: #{tpu_custom_call.1} parent=1 // pred_region
      %556 = vsyncadd [#allocation21], 0
      %s558 = sshll.u32 [#allocation20], 4
      %s559 = int_to_ptr.vmem [resolvable:$true] %s558
      %s560 = sshll.u32 %s14, 4
      %s561 = int_to_ptr.hbm [resolvable:$true] %s560
      %563 = dma.vmem_to_hbm [thread:$0]  %s559, 128, %s561, [#allocation21]
    $region101: #{tpu_custom_call.1} parent=1 // pred_fallthru
      _
    // Predicated region
    $region102: #{tpu_custom_call.1} parent=1 // pred_check
      _
    $region103: #{tpu_custom_call.1} parent=1 // pred_check_branch
      %565 = sbr.rel (0) target = $region105
    $region104: #{tpu_custom_call.1} parent=1 // pred_region
      %567 = dma.done [#allocation4], 128
    $region105: #{tpu_custom_call.1} parent=1 // pred_fallthru
      _
    // Predicated region
    $region106: #{tpu_custom_call.1} parent=1 // pred_check
      _
    $region107: #{tpu_custom_call.1} parent=1 // pred_check_branch
      %569 = sbr.rel (0) target = $region109
    $region108: #{tpu_custom_call.1} parent=1 // pred_region
      %571 = dma.done [#allocation21], 128
    $region109: #{tpu_custom_call.1} parent=1 // pred_fallthru
      _
    %572 = vsyncpa [#allocation3], 1
    %573 = vsyncpa [#allocation6], 1
    %574 = vsyncpa [#allocation9], 1
    %575 = vsyncpa [#allocation12], 1
    %576 = vsyncpa [#allocation15], 1
    %577 = vsyncpa [#allocation18], 1
    %578 = vsyncpa [#allocation4], 1
    %579 = vsyncpa [#allocation21], 1

// kernel: tpu_custom_call.1
$region0: #{tpu_custom_call.1}
  #allocation0 [shape = 'u32[]', space=smem, size = 0x4, offset = 0x4, fixed_abs, tag = 'smem constant byte address 0x4 - core index']
  #allocation1 [shape = 'u32[72,128]{1,0:T(1,128)}', space=vmem, size = 0x9000, scoped, tag = 'internal scratch']
  %s0 = inlined_call_operand.hbm [shape: f32[8,24], index: 0, kind: input, shape index: {}]
  %s1 = inlined_call_operand.hbm [shape: f32[24,128], index: 1, kind: input, shape index: {}]
  %s2 = inlined_call_operand.hbm [shape: f32[3,128], index: 2, kind: input, shape index: {}]
  %s3 = inlined_call_operand.hbm [shape: f32[128,128], index: 3, kind: input, shape index: {}]
  %s4 = inlined_call_operand.hbm [shape: f32[3,128], index: 4, kind: input, shape index: {}]
  %s5 = inlined_call_operand.hbm [shape: f32[128,128], index: 5, kind: input, shape index: {}]
  %s6 = inlined_call_operand.hbm [shape: f32[1,128], index: 6, kind: input, shape index: {}]
  %s7 = inlined_call_operand.hbm [shape: f32[24,128], index: 7, kind: input, shape index: {}]
  %s8 = inlined_call_operand.vmem [shape: f32[3,128], index: 8, kind: input, shape index: {}]
  %s9 = inlined_call_operand.hbm [shape: f32[128,128], index: 9, kind: input, shape index: {}]
  %s10 = inlined_call_operand.vmem [shape: f32[3,128], index: 10, kind: input, shape index: {}]
  %s11 = inlined_call_operand.hbm [shape: f32[128,128], index: 11, kind: input, shape index: {}]
  %s12 = inlined_call_operand.vmem [shape: f32[1,128], index: 12, kind: input, shape index: {}]
  %s13 = inlined_call_operand.hbm [shape: f32[8,128], index: 13, kind: output, shape index: {0}]
  %s14 = inlined_call_operand.hbm [shape: f32[8,128], index: 14, kind: output, shape index: {1}]
  %15 = xla_tuple %s13, %s14
  %s16 = sld [smem:[#allocation0]]
  $region110: #{tpu_custom_call.1} parent=0
    _
  %s18 = ssub.s32 1, %s16
  %s19 = scalar_select 0, %s18, %s16
  $region1: #{tpu_custom_call.1} parent=0
    #allocation2 [shape = 'u8[4096]{0}', space=vmem, size = 0x1000, scoped, tag = 'input window, operand 0, single buffered']
    #allocation3 [shape = 's32[1]{0}', space=sflag, size = 0x4, scoped, tag = 'scoped memory for tpu_custom_call.1']
    #allocation4 [shape = 's32[1]{0}', space=sflag, size = 0x4, scoped, tag = 'scoped memory for tpu_custom_call.1']
    #allocation5 [shape = 'u8[12288]{0}', space=vmem, size = 0x3000, scoped, tag = 'input window, operand 1, single buffered']
    #allocation6 [shape = 's32[1]{0}', space=sflag, size = 0x4, scoped, tag = 'scoped memory for tpu_custom_call.1']
    #allocation7 [shape = 'u8[2048]{0}', space=vmem, size = 0x800, scoped, tag = 'input window, operand 2, single buffered']
    #allocation8 [shape = 'u8[65536]{0}', space=vmem, size = 0x10000, scoped, tag = 'input window, operand 3, single buffered']
    #allocation9 [shape = 's32[1]{0}', space=sflag, size = 0x4, scoped, tag = 'scoped memory for tpu_custom_call.1']
    #allocation10 [shape = 'u8[2048]{0}', space=vmem, size = 0x800, scoped, tag = 'input window, operand 4, single buffered']
    #allocation11 [shape = 'u8[65536]{0}', space=vmem, size = 0x10000, scoped, tag = 'input window, operand 5, single buffered']
    #allocation12 [shape = 's32[1]{0}', space=sflag, size = 0x4, scoped, tag = 'scoped memory for tpu_custom_call.1']
    #allocation13 [shape = 'u8[512]{0}', space=vmem, size = 0x400, scoped, tag = 'input window, operand 6, single buffered']
    #allocation14 [shape = 'u8[12288]{0}', space=vmem, size = 0x3000, scoped, tag = 'input window, operand 7, single buffered']
    #allocation15 [shape = 's32[1]{0}', space=sflag, size = 0x4, scoped, tag = 'scoped memory for tpu_custom_call.1']
    #allocation16 [shape = 'u8[65536]{0}', space=vmem, size = 0x10000, scoped, tag = 'input window, operand 9, single buffered']
    #allocation17 [shape = 'u8[65536]{0}', space=vmem, size = 0x10000, scoped, tag = 'input window, operand 11, single buffered']
    #allocation18 [shape = 's32[1]{0}', space=sflag, size = 0x4, scoped, tag = 'scoped memory for tpu_custom_call.1']
    #allocation19 [shape = 'u8[4096]{0}', space=vmem, size = 0x1000, scoped, tag = 'output window, operand 0, single buffered']
    #allocation20 [shape = 'u8[4096]{0}', space=vmem, size = 0x1000, scoped, tag = 'output window, operand 1, single buffered']
    #allocation21 [shape = 's32[1]{0}', space=sflag, size = 0x4, scoped, tag = 'scoped memory for tpu_custom_call.1']
    %20 = vsyncpa [#allocation3], 0
    %21 = vsyncpa [#allocation6], 0
    %22 = vsyncpa [#allocation9], 0
    %23 = vsyncpa [#allocation12], 0
    %24 = vsyncpa [#allocation15], 0
    %25 = vsyncpa [#allocation18], 0
    %26 = vsyncpa [#allocation4], 0
    %27 = vsyncpa [#allocation21], 0
    // Predicated region
    $region2: #{tpu_custom_call.1} parent=1 // pred_check
      _
    $region3: #{tpu_custom_call.1} parent=1 // pred_check_branch
      %29 = sbr.rel (0) target = $region5
    $region4: #{tpu_custom_call.1} parent=1 // pred_region
      %31 = vsyncadd [#allocation3], 0
      %s33 = sshll.u32 %s0, 4
      %s34 = int_to_ptr.hbm [resolvable:$true] %s33
      %s35 = sshll.u32 [#allocation2], 4
      %s36 = int_to_ptr.vmem [resolvable:$true] %s35
      %38 = dma.hbm_to_vmem [thread:$0]  %s34, 128, %s36, [#allocation3]
    $region5: #{tpu_custom_call.1} parent=1 // pred_fallthru
      _
    // Predicated region
    $region6: #{tpu_custom_call.1} parent=1 // pred_check
      _
    $region7: #{tpu_custom_call.1} parent=1 // pred_check_branch
      %40 = sbr.rel (0) target = $region9
    $region8: #{tpu_custom_call.1} parent=1 // pred_region
      %42 = vsyncadd [#allocation6], 0
      %s43 = sshll.u32 %s1, 4
      %s44 = int_to_ptr.hbm [resolvable:$true] %s43
      %s45 = sshll.u32 [#allocation5], 4
      %s46 = int_to_ptr.vmem [resolvable:$true] %s45
      %51 = dma.hbm_to_vmem [thread:$0]  %s44, 384, %s46, [#allocation6], 128, 128, 8
    $region9: #{tpu_custom_call.1} parent=1 // pred_fallthru
      _
    // Predicated region
    $region10: #{tpu_custom_call.1} parent=1 // pred_check
      _
    $region11: #{tpu_custom_call.1} parent=1 // pred_check_branch
      %53 = sbr.rel (0) target = $region13
    $region12: #{tpu_custom_call.1} parent=1 // pred_region
      %55 = vsyncadd [#allocation6], 0
      %s57 = sshll.u32 %s2, 4
      %s58 = int_to_ptr.hbm [resolvable:$true] %s57
      %s59 = sshll.u32 [#allocation7], 4
      %s60 = int_to_ptr.vmem [resolvable:$true] %s59
      %62 = dma.hbm_to_vmem [thread:$0]  %s58, 64, %s60, [#allocation6]
    $region13: #{tpu_custom_call.1} parent=1 // pred_fallthru
      _
    // Predicated region
    $region14: #{tpu_custom_call.1} parent=1 // pred_check
      _
    $region15: #{tpu_custom_call.1} parent=1 // pred_check_branch
      %64 = sbr.rel (0) target = $region17
    $region16: #{tpu_custom_call.1} parent=1 // pred_region
      %66 = vsyncadd [#allocation9], 0
      %s67 = sshll.u32 %s3, 4
      %s68 = int_to_ptr.hbm [resolvable:$true] %s67
      %s69 = sshll.u32 [#allocation8], 4
      %s70 = int_to_ptr.vmem [resolvable:$true] %s69
      %75 = dma.hbm_to_vmem [thread:$0]  %s68, 2048, %s70, [#allocation9], 128, 128, 8
    $region17: #{tpu_custom_call.1} parent=1 // pred_fallthru
      _
    // Predicated region
    $region18: #{tpu_custom_call.1} parent=1 // pred_check
      _
    $region19: #{tpu_custom_call.1} parent=1 // pred_check_branch
      %77 = sbr.rel (0) target = $region21
    $region20: #{tpu_custom_call.1} parent=1 // pred_region
      %79 = vsyncadd [#allocation9], 0
      %s81 = sshll.u32 %s4, 4
      %s82 = int_to_ptr.hbm [resolvable:$true] %s81
      %s83 = sshll.u32 [#allocation10], 4
      %s84 = int_to_ptr.vmem [resolvable:$true] %s83
      %86 = dma.hbm_to_vmem [thread:$0]  %s82, 64, %s84, [#allocation9]
    $region21: #{tpu_custom_call.1} parent=1 // pred_fallthru
      _
    // Predicated region
    $region22: #{tpu_custom_call.1} parent=1 // pred_check
      _
    $region23: #{tpu_custom_call.1} parent=1 // pred_check_branch
      %88 = sbr.rel (0) target = $region25
    $region24: #{tpu_custom_call.1} parent=1 // pred_region
      %90 = vsyncadd [#allocation12], 0
      %s91 = sshll.u32 %s5, 4
      %s92 = int_to_ptr.hbm [resolvable:$true] %s91
      %s93 = sshll.u32 [#allocation11], 4
      %s94 = int_to_ptr.vmem [resolvable:$true] %s93
      %99 = dma.hbm_to_vmem [thread:$0]  %s92, 2048, %s94, [#allocation12], 128, 128, 8
    $region25: #{tpu_custom_call.1} parent=1 // pred_fallthru
      _
    // Predicated region
    $region26: #{tpu_custom_call.1} parent=1 // pred_check
      _
    $region27: #{tpu_custom_call.1} parent=1 // pred_check_branch
      %101 = sbr.rel (0) target = $region29
    $region28: #{tpu_custom_call.1} parent=1 // pred_region
      %103 = vsyncadd [#allocation12], 0
      %s105 = sshll.u32 %s6, 4
      %s106 = int_to_ptr.hbm [resolvable:$true] %s105
      %s107 = sshll.u32 [#allocation13], 4
      %s108 = int_to_ptr.vmem [resolvable:$true] %s107
      %110 = dma.hbm_to_vmem [thread:$0]  %s106, 16, %s108, [#allocation12]
    $region29: #{tpu_custom_call.1} parent=1 // pred_fallthru
      _
    // Predicated region
    $region30: #{tpu_custom_call.1} parent=1 // pred_check
      _
    $region31: #{tpu_custom_call.1} parent=1 // pred_check_branch
      %112 = sbr.rel (0) target = $region33
    $region32: #{tpu_custom_call.1} parent=1 // pred_region
      %114 = vsyncadd [#allocation15], 0
      %s115 = sshll.u32 %s7, 4
      %s116 = int_to_ptr.hbm [resolvable:$true] %s115
      %s117 = sshll.u32 [#allocation14], 4
      %s118 = int_to_ptr.vmem [resolvable:$true] %s117
      %123 = dma.hbm_to_vmem [thread:$0]  %s116, 384, %s118, [#allocation15], 128, 128, 8
    $region33: #{tpu_custom_call.1} parent=1 // pred_fallthru
      _
    // Predicated region
    $region34: #{tpu_custom_call.1} parent=1 // pred_check
      _
    $region35: #{tpu_custom_call.1} parent=1 // pred_check_branch
      %125 = sbr.rel (0) target = $region37
    $region36: #{tpu_custom_call.1} parent=1 // pred_region
      _
    $region37: #{tpu_custom_call.1} parent=1 // pred_fallthru
      _
    // Predicated region
    $region38: #{tpu_custom_call.1} parent=1 // pred_check
      _
    $region39: #{tpu_custom_call.1} parent=1 // pred_check_branch
      %127 = sbr.rel (0) target = $region41
    $region40: #{tpu_custom_call.1} parent=1 // pred_region
      %129 = vsyncadd [#allocation15], 0
      %s130 = sshll.u32 %s9, 4
      %s131 = int_to_ptr.hbm [resolvable:$true] %s130
      %s132 = sshll.u32 [#allocation16], 4
      %s133 = int_to_ptr.vmem [resolvable:$true] %s132
      %138 = dma.hbm_to_vmem [thread:$0]  %s131, 2048, %s133, [#allocation15], 128, 128, 8
    $region41: #{tpu_custom_call.1} parent=1 // pred_fallthru
      _
    // Predicated region
    $region42: #{tpu_custom_call.1} parent=1 // pred_check
      _
    $region43: #{tpu_custom_call.1} parent=1 // pred_check_branch
      %140 = sbr.rel (0) target = $region45
    $region44: #{tpu_custom_call.1} parent=1 // pred_region
      _
    $region45: #{tpu_custom_call.1} parent=1 // pred_fallthru
      _
    // Predicated region
    $region46: #{tpu_custom_call.1} parent=1 // pred_check
      _
    $region47: #{tpu_custom_call.1} parent=1 // pred_check_branch
      %142 = sbr.rel (0) target = $region49
    $region48: #{tpu_custom_call.1} parent=1 // pred_region
      %144 = vsyncadd [#allocation18], 0
      %s145 = sshll.u32 %s11, 4
      %s146 = int_to_ptr.hbm [resolvable:$true] %s145
      %s147 = sshll.u32 [#allocation17], 4
      %s148 = int_to_ptr.vmem [resolvable:$true] %s147
      %153 = dma.hbm_to_vmem [thread:$0]  %s146, 2048, %s148, [#allocation18], 128, 128, 8
    $region49: #{tpu_custom_call.1} parent=1 // pred_fallthru
      _
    // Predicated region
    $region50: #{tpu_custom_call.1} parent=1 // pred_check
      _
    $region51: #{tpu_custom_call.1} parent=1 // pred_check_branch
      %155 = sbr.rel (0) target = $region53
    $region52: #{tpu_custom_call.1} parent=1 // pred_region
      _
    $region53: #{tpu_custom_call.1} parent=1 // pred_fallthru
      _
    // Predicated region
    $region54: #{tpu_custom_call.1} parent=1 // pred_check
      _
    $region55: #{tpu_custom_call.1} parent=1 // pred_check_branch
      %157 = sbr.rel (0) target = $region57
    $region56: #{tpu_custom_call.1} parent=1 // pred_region
      %159 = dma.done [#allocation3], 128
    $region57: #{tpu_custom_call.1} parent=1 // pred_fallthru
      _
    // Predicated region
    $region58: #{tpu_custom_call.1} parent=1 // pred_check
      _
    $region59: #{tpu_custom_call.1} parent=1 // pred_check_branch
      %161 = sbr.rel (0) target = $region61
    $region60: #{tpu_custom_call.1} parent=1 // pred_region
      %163 = dma.done [#allocation6], 384
    $region61: #{tpu_custom_call.1} parent=1 // pred_fallthru
      _
    // Predicated region
    $region62: #{tpu_custom_call.1} parent=1 // pred_check
      _
    $region63: #{tpu_custom_call.1} parent=1 // pred_check_branch
      %165 = sbr.rel (0) target = $region65
    $region64: #{tpu_custom_call.1} parent=1 // pred_region
      %167 = dma.done [#allocation6], 64
    $region65: #{tpu_custom_call.1} parent=1 // pred_fallthru
      _
    // Predicated region
    $region66: #{tpu_custom_call.1} parent=1 // pred_check
      _
    $region67: #{tpu_custom_call.1} parent=1 // pred_check_branch
      %169 = sbr.rel (0) target = $region69
    $region68: #{tpu_custom_call.1} parent=1 // pred_region
      %171 = dma.done [#allocation9], 2048
    $region69: #{tpu_custom_call.1} parent=1 // pred_fallthru
      _
    // Predicated region
    $region70: #{tpu_custom_call.1} parent=1 // pred_check
      _
    $region71: #{tpu_custom_call.1} parent=1 // pred_check_branch
      %173 = sbr.rel (0) target = $region73
    $region72: #{tpu_custom_call.1} parent=1 // pred_region
      %175 = dma.done [#allocation9], 64
    $region73: #{tpu_custom_call.1} parent=1 // pred_fallthru
      _
    // Predicated region
    $region74: #{tpu_custom_call.1} parent=1 // pred_check
      _
    $region75: #{tpu_custom_call.1} parent=1 // pred_check_branch
      %177 = sbr.rel (0) target = $region77
    $region76: #{tpu_custom_call.1} parent=1 // pred_region
      %179 = dma.done [#allocation12], 2048
    $region77: #{tpu_custom_call.1} parent=1 // pred_fallthru
      _
    // Predicated region
    $region78: #{tpu_custom_call.1} parent=1 // pred_check
      _
    $region79: #{tpu_custom_call.1} parent=1 // pred_check_branch
      %181 = sbr.rel (0) target = $region81
    $region80: #{tpu_custom_call.1} parent=1 // pred_region
      %183 = dma.done [#allocation12], 16
    $region81: #{tpu_custom_call.1} parent=1 // pred_fallthru
      _
    // Predicated region
    $region82: #{tpu_custom_call.1} parent=1 // pred_check
      _
    $region83: #{tpu_custom_call.1} parent=1 // pred_check_branch
      %185 = sbr.rel (0) target = $region85
    $region84: #{tpu_custom_call.1} parent=1 // pred_region
      %187 = dma.done [#allocation15], 384
    $region85: #{tpu_custom_call.1} parent=1 // pred_fallthru
      _
    // Predicated region
    $region86: #{tpu_custom_call.1} parent=1 // pred_check
      _
    $region87: #{tpu_custom_call.1} parent=1 // pred_check_branch
      %189 = sbr.rel (0) target = $region89
    $region88: #{tpu_custom_call.1} parent=1 // pred_region
      %191 = dma.done [#allocation15], 2048
    $region89: #{tpu_custom_call.1} parent=1 // pred_fallthru
      _
    // Predicated region
    $region90: #{tpu_custom_call.1} parent=1 // pred_check
      _
    $region91: #{tpu_custom_call.1} parent=1 // pred_check_branch
      %193 = sbr.rel (0) target = $region93
    $region92: #{tpu_custom_call.1} parent=1 // pred_region
      %195 = dma.done [#allocation18], 2048
    $region93: #{tpu_custom_call.1} parent=1 // pred_fallthru
      _
    %v196 = vld [vmem:[#allocation2] sm:$0xff]
    %v197 = vld [vmem:[#allocation5] sm:$0xff]
    %v198 = vld [vmem:[#allocation5 + $0x8] sm:$0xff]
    %v199 = vld [vmem:[#allocation5 + $0x10] sm:$0xff]
    %v200 = vld [vmem:[#allocation7] sm:$0x1]
    %v201 = vperm.slane %v200, 0
    %vm202 = vcmask 195584
    %v204 = vsel %vm202, %v196, 0
    %206 = vmatpush.msra.mxu0 0.0
    %207 = vmatpush.msra.mxu0 0.0
    %208 = vmatpush.msra.mxu0 0.0
    %209 = vmatpush.msra.mxu0 0.0
    %210 = vmatpush.msra.mxu0 0.0
    %211 = vmatpush.msra.mxu0 0.0
    %212 = vmatpush.msra.mxu0 0.0
    %213 = vmatpush.msra.mxu0 0.0
    %214 = vmatpush.msra.mxu0 0.0
    %215 = vmatpush.msra.mxu0 0.0
    %216 = vmatpush.msra.mxu0 0.0
    %217 = vmatpush.msra.mxu0 0.0
    %218 = vmatpush.msra.mxu0 0.0
    %219 = vmatpush.msra.mxu0 %v199
    %220 = vmatpush.msra.mxu0 %v198
    %221 = vmatpush.msra.mxu0 %v197
    %222 = vmatmul.f32.gmra.mxu0 %v204
    %v223 = vpop.f32.mrf.mxu0
    %v224 = vadd.f32 %v201, %v223
    %225 = vdwg.mxu0
    %v226 = vld [vmem:[#allocation7 + $0x1] sm:$0x1]
    %v227 = vld [vmem:[#allocation7 + $0x2] sm:$0x1]
    %228 = vadd.xlane.f32.xlu0 %v224
    %v229 = vpop.xlane.xlu0 %228
    %v230 = vmul.f32 %v229, 0.03125
    %v231 = vsub.f32 %v224, %v230
    %v232 = vlaneseq
    %v233 = vand.u32 %v232, 127
    %vm234 = vcmp.lt.s32.totalorder %v233, 32
    %v235 = vsel %vm234, %v231, 0.0
    %v236 = vmul.f32 %v235, %v235
    %237 = vadd.xlane.f32.xlu0 %v236
    %v238 = vpop.xlane.xlu0 %237
    %v239 = vmul.f32 %v238, 0.03125
    %v240 = vadd.f32 %v239, 1e-05
    %v241 = vrsqrt.pop %v240
    %v242 = vmul.f32 %v241, %v240
    %v243 = vmul.f32 %v242, %v241
    %v244 = vmul.f32 0.5, %v243
    %v245 = vsub.f32 1.5, %v244
    %v246 = vmul.f32 %v241, %v245
    %vm247 = vweird.f32 %v240
    %vm248 = vweird.f32 %v241
    %vm249 = vmor %vm247, %vm248
    %v250 = vsel %vm249, %v241, %v246
    %v251 = vmul.f32 %v235, %v250
    %v252 = vperm.slane %v226, 0
    %v253 = vmul.f32 %v251, %v252
    %v254 = vperm.slane %v227, 0
    %v255 = vadd.f32 %v253, %v254
    %v256 = vmax.f32 %v255, 0.0
    %v257 = vld [vmem:[#allocation8] sm:$0xff]
    %v258 = vld [vmem:[#allocation8 + $0x8] sm:$0xff]
    %v259 = vld [vmem:[#allocation8 + $0x10] sm:$0xff]
    %v260 = vld [vmem:[#allocation8 + $0x18] sm:$0xff]
    %v261 = vld [vmem:[#allocation8 + $0x20] sm:$0xff]
    %v262 = vld [vmem:[#allocation8 + $0x28] sm:$0xff]
    %v263 = vld [vmem:[#allocation8 + $0x30] sm:$0xff]
    %v264 = vld [vmem:[#allocation8 + $0x38] sm:$0xff]
    %v265 = vld [vmem:[#allocation8 + $0x40] sm:$0xff]
    %v266 = vld [vmem:[#allocation8 + $0x48] sm:$0xff]
    %v267 = vld [vmem:[#allocation8 + $0x50] sm:$0xff]
    %v268 = vld [vmem:[#allocation8 + $0x58] sm:$0xff]
    %v269 = vld [vmem:[#allocation8 + $0x60] sm:$0xff]
    %v270 = vld [vmem:[#allocation8 + $0x68] sm:$0xff]
    %v271 = vld [vmem:[#allocation8 + $0x70] sm:$0xff]
    %v272 = vld [vmem:[#allocation8 + $0x78] sm:$0xff]
    %v273 = vld [vmem:[#allocation10] sm:$0x1]
    %v274 = vperm.slane %v273, 0
    %275 = vmatpush.msra.mxu0 %v272
    %276 = vmatpush.msra.mxu0 %v271
    %277 = vmatpush.msra.mxu0 %v270
    %278 = vmatpush.msra.mxu0 %v269
    %279 = vmatpush.msra.mxu0 %v268
    %280 = vmatpush.msra.mxu0 %v267
    %281 = vmatpush.msra.mxu0 %v266
    %282 = vmatpush.msra.mxu0 %v265
    %283 = vmatpush.msra.mxu0 %v264
    %284 = vmatpush.msra.mxu0 %v263
    %285 = vmatpush.msra.mxu0 %v262
    %286 = vmatpush.msra.mxu0 %v261
    %287 = vmatpush.msra.mxu0 %v260
    %288 = vmatpush.msra.mxu0 %v259
    %289 = vmatpush.msra.mxu0 %v258
    %290 = vmatpush.msra.mxu0 %v257
    %291 = vmatmul.f32.gmra.mxu0 %v256
    %v292 = vpop.f32.mrf.mxu0
    %v293 = vadd.f32 %v274, %v292
    %294 = vdwg.mxu0
    %v295 = vld [vmem:[#allocation10 + $0x1] sm:$0x1]
    %v296 = vld [vmem:[#allocation10 + $0x2] sm:$0x1]
    %297 = vadd.xlane.f32.xlu0 %v293
    %v298 = vpop.xlane.xlu0 %297
    %v299 = vmul.f32 %v298, 0.015625
    %v300 = vsub.f32 %v293, %v299
    %vm301 = vcmp.lt.s32.totalorder %v233, 64
    %v302 = vsel %vm301, %v300, 0.0
    %v303 = vmul.f32 %v302, %v302
    %304 = vadd.xlane.f32.xlu0 %v303
    %v305 = vpop.xlane.xlu0 %304
    %v306 = vmul.f32 %v305, 0.015625
    %v307 = vadd.f32 %v306, 1e-05
    %v308 = vrsqrt.pop %v307
    %v309 = vmul.f32 %v308, %v307
    %v310 = vmul.f32 %v309, %v308
    %v311 = vmul.f32 0.5, %v310
    %v312 = vsub.f32 1.5, %v311
    %v313 = vmul.f32 %v308, %v312
    %vm314 = vweird.f32 %v307
    %vm315 = vweird.f32 %v308
    %vm316 = vmor %vm314, %vm315
    %v317 = vsel %vm316, %v308, %v313
    %v318 = vmul.f32 %v302, %v317
    %v319 = vperm.slane %v295, 0
    %v320 = vmul.f32 %v318, %v319
    %v321 = vperm.slane %v296, 0
    %v322 = vadd.f32 %v320, %v321
    %v323 = vmax.f32 %v322, 0.0
    %v324 = vld [vmem:[#allocation11] sm:$0xff]
    %v325 = vld [vmem:[#allocation11 + $0x8] sm:$0xff]
    %v326 = vld [vmem:[#allocation11 + $0x10] sm:$0xff]
    %v327 = vld [vmem:[#allocation11 + $0x18] sm:$0xff]
    %v328 = vld [vmem:[#allocation11 + $0x20] sm:$0xff]
    %v329 = vld [vmem:[#allocation11 + $0x28] sm:$0xff]
    %v330 = vld [vmem:[#allocation11 + $0x30] sm:$0xff]
    %v331 = vld [vmem:[#allocation11 + $0x38] sm:$0xff]
    %v332 = vld [vmem:[#allocation11 + $0x40] sm:$0xff]
    %v333 = vld [vmem:[#allocation11 + $0x48] sm:$0xff]
    %v334 = vld [vmem:[#allocation11 + $0x50] sm:$0xff]
    %v335 = vld [vmem:[#allocation11 + $0x58] sm:$0xff]
    %v336 = vld [vmem:[#allocation11 + $0x60] sm:$0xff]
    %v337 = vld [vmem:[#allocation11 + $0x68] sm:$0xff]
    %v338 = vld [vmem:[#allocation11 + $0x70] sm:$0xff]
    %v339 = vld [vmem:[#allocation11 + $0x78] sm:$0xff]
    %v340 = vld [vmem:[#allocation13] sm:$0x1]
    %v342 = vperm.slane %v340, 0
    %344 = vmatpush.msra.mxu0 %v339
    %345 = vmatpush.msra.mxu0 %v338
    %346 = vmatpush.msra.mxu0 %v337
    %347 = vmatpush.msra.mxu0 %v336
    %348 = vmatpush.msra.mxu0 %v335
    %349 = vmatpush.msra.mxu0 %v334
    %350 = vmatpush.msra.mxu0 %v333
    %351 = vmatpush.msra.mxu0 %v332
    %352 = vmatpush.msra.mxu0 %v331
    %353 = vmatpush.msra.mxu0 %v330
    %354 = vmatpush.msra.mxu0 %v329
    %355 = vmatpush.msra.mxu0 %v328
    %356 = vmatpush.msra.mxu0 %v327
    %357 = vmatpush.msra.mxu0 %v326
    %358 = vmatpush.msra.mxu0 %v325
    %359 = vmatpush.msra.mxu0 %v324
    %360 = vmatmul.f32.gmra.mxu0 %v323
    %v361 = vpop.f32.mrf.mxu0
    %v362 = vadd.f32 %v342, %v361
    %363 = vdwg.mxu0
    %vm364 = vcmp.gt.f32.partialorder %v362, 20.0
    %v365 = vmin.f32 %v362, 20.0
    %v366 = vmul.f32 %v365, 1.442695
    %v367 = vpow.pop %v366
    %v368 = vadd.f32 %v367, 1.0
    %v369 = vlog2.pop %v368
    %v370 = vmul.f32 %v369, 0.6931472
    %v371 = vmul.f32 -0.5, %v367
    %v372 = vadd.f32 %v371, 1.0
    %v373 = vmul.f32 %v372, %v367
    %v374 = vand.u32 2147483647, %v367
    %vm375 = vcmp.lt.f32.partialorder %v374, 0.0004427343
    %v376 = vsel %vm375, %v373, %v370
    %v377 = vsel %vm364, %v362, %v376
    %378 = vst [vmem:[#allocation19] sm:$0xff] %v377
    %v379 = vld [vmem:[#allocation14] sm:$0xff]
    %v380 = vld [vmem:[#allocation14 + $0x8] sm:$0xff]
    %v381 = vld [vmem:[#allocation14 + $0x10] sm:$0xff]
    %v382 = vld [vmem:[%s8] sm:$0x1]
    %v383 = vperm.slane %v382, 0
    %384 = vmatpush.msra.mxu0 0.0
    %385 = vmatpush.msra.mxu0 0.0
    %386 = vmatpush.msra.mxu0 0.0
    %387 = vmatpush.msra.mxu0 0.0
    %388 = vmatpush.msra.mxu0 0.0
    %389 = vmatpush.msra.mxu0 0.0
    %390 = vmatpush.msra.mxu0 0.0
    %391 = vmatpush.msra.mxu0 0.0
    %392 = vmatpush.msra.mxu0 0.0
    %393 = vmatpush.msra.mxu0 0.0
    %394 = vmatpush.msra.mxu0 0.0
    %395 = vmatpush.msra.mxu0 0.0
    %396 = vmatpush.msra.mxu0 0.0
    %397 = vmatpush.msra.mxu0 %v381
    %398 = vmatpush.msra.mxu0 %v380
    %399 = vmatpush.msra.mxu0 %v379
    %400 = vmatmul.f32.gmra.mxu0 %v204
    %v401 = vpop.f32.mrf.mxu0
    %v402 = vadd.f32 %v383, %v401
    %403 = vdwg.mxu0
    %v404 = vld [vmem:[%s8 + $0x1] sm:$0x1]
    %v405 = vld [vmem:[%s8 + $0x2] sm:$0x1]
    %406 = vadd.xlane.f32.xlu0 %v402
    %v407 = vpop.xlane.xlu0 %406
    %v408 = vmul.f32 %v407, 0.03125
    %v409 = vsub.f32 %v402, %v408
    %v410 = vsel %vm234, %v409, 0.0
    %v411 = vmul.f32 %v410, %v410
    %412 = vadd.xlane.f32.xlu0 %v411
    %v413 = vpop.xlane.xlu0 %412
    %v414 = vmul.f32 %v413, 0.03125
    %v415 = vadd.f32 %v414, 1e-05
    %v416 = vrsqrt.pop %v415
    %v417 = vmul.f32 %v416, %v415
    %v418 = vmul.f32 %v417, %v416
    %v419 = vmul.f32 0.5, %v418
    %v420 = vsub.f32 1.5, %v419
    %v421 = vmul.f32 %v416, %v420
    %vm422 = vweird.f32 %v415
    %vm423 = vweird.f32 %v416
    %vm424 = vmor %vm422, %vm423
    %v425 = vsel %vm424, %v416, %v421
    %v426 = vmul.f32 %v410, %v425
    %v427 = vperm.slane %v404, 0
    %v428 = vmul.f32 %v426, %v427
    %v429 = vperm.slane %v405, 0
    %v430 = vadd.f32 %v428, %v429
    %v431 = vmax.f32 %v430, 0.0
    %v432 = vld [vmem:[#allocation16] sm:$0xff]
    %v433 = vld [vmem:[#allocation16 + $0x8] sm:$0xff]
    %v434 = vld [vmem:[#allocation16 + $0x10] sm:$0xff]
    %v435 = vld [vmem:[#allocation16 + $0x18] sm:$0xff]
    %v436 = vld [vmem:[#allocation16 + $0x20] sm:$0xff]
    %v437 = vld [vmem:[#allocation16 + $0x28] sm:$0xff]
    %v438 = vld [vmem:[#allocation16 + $0x30] sm:$0xff]
    %v439 = vld [vmem:[#allocation16 + $0x38] sm:$0xff]
    %v440 = vld [vmem:[#allocation16 + $0x40] sm:$0xff]
    %v441 = vld [vmem:[#allocation16 + $0x48] sm:$0xff]
    %v442 = vld [vmem:[#allocation16 + $0x50] sm:$0xff]
    %v443 = vld [vmem:[#allocation16 + $0x58] sm:$0xff]
    %v444 = vld [vmem:[#allocation16 + $0x60] sm:$0xff]
    %v445 = vld [vmem:[#allocation16 + $0x68] sm:$0xff]
    %v446 = vld [vmem:[#allocation16 + $0x70] sm:$0xff]
    %v447 = vld [vmem:[#allocation16 + $0x78] sm:$0xff]
    %v448 = vld [vmem:[%s10] sm:$0x1]
    %v449 = vperm.slane %v448, 0
    %450 = vmatpush.msra.mxu0 %v447
    %451 = vmatpush.msra.mxu0 %v446
    %452 = vmatpush.msra.mxu0 %v445
    %453 = vmatpush.msra.mxu0 %v444
    %454 = vmatpush.msra.mxu0 %v443
    %455 = vmatpush.msra.mxu0 %v442
    %456 = vmatpush.msra.mxu0 %v441
    %457 = vmatpush.msra.mxu0 %v440
    %458 = vmatpush.msra.mxu0 %v439
    %459 = vmatpush.msra.mxu0 %v438
    %460 = vmatpush.msra.mxu0 %v437
    %461 = vmatpush.msra.mxu0 %v436
    %462 = vmatpush.msra.mxu0 %v435
    %463 = vmatpush.msra.mxu0 %v434
    %464 = vmatpush.msra.mxu0 %v433
    %465 = vmatpush.msra.mxu0 %v432
    %466 = vmatmul.f32.gmra.mxu0 %v431
    %v467 = vpop.f32.mrf.mxu0
    %v468 = vadd.f32 %v449, %v467
    %469 = vdwg.mxu0
    %v470 = vld [vmem:[%s10 + $0x1] sm:$0x1]
    %v471 = vld [vmem:[%s10 + $0x2] sm:$0x1]
    %472 = vadd.xlane.f32.xlu0 %v468
    %v473 = vpop.xlane.xlu0 %472
    %v474 = vmul.f32 %v473, 0.015625
    %v475 = vsub.f32 %v468, %v474
    %v476 = vsel %vm301, %v475, 0.0
    %v477 = vmul.f32 %v476, %v476
    %478 = vadd.xlane.f32.xlu0 %v477
    %v479 = vpop.xlane.xlu0 %478
    %v480 = vmul.f32 %v479, 0.015625
    %v481 = vadd.f32 %v480, 1e-05
    %v482 = vrsqrt.pop %v481
    %v483 = vmul.f32 %v482, %v481
    %v484 = vmul.f32 %v483, %v482
    %v485 = vmul.f32 0.5, %v484
    %v486 = vsub.f32 1.5, %v485
    %v487 = vmul.f32 %v482, %v486
    %vm488 = vweird.f32 %v481
    %vm489 = vweird.f32 %v482
    %vm490 = vmor %vm488, %vm489
    %v491 = vsel %vm490, %v482, %v487
    %v492 = vmul.f32 %v476, %v491
    %v493 = vperm.slane %v470, 0
    %v494 = vmul.f32 %v492, %v493
    %v495 = vperm.slane %v471, 0
    %v496 = vadd.f32 %v494, %v495
    %v497 = vmax.f32 %v496, 0.0
    %v498 = vld [vmem:[#allocation17] sm:$0xff]
    %v499 = vld [vmem:[#allocation17 + $0x8] sm:$0xff]
    %v500 = vld [vmem:[#allocation17 + $0x10] sm:$0xff]
    %v501 = vld [vmem:[#allocation17 + $0x18] sm:$0xff]
    %v502 = vld [vmem:[#allocation17 + $0x20] sm:$0xff]
    %v503 = vld [vmem:[#allocation17 + $0x28] sm:$0xff]
    %v504 = vld [vmem:[#allocation17 + $0x30] sm:$0xff]
    %v505 = vld [vmem:[#allocation17 + $0x38] sm:$0xff]
    %v506 = vld [vmem:[#allocation17 + $0x40] sm:$0xff]
    %v507 = vld [vmem:[#allocation17 + $0x48] sm:$0xff]
    %v508 = vld [vmem:[#allocation17 + $0x50] sm:$0xff]
    %v509 = vld [vmem:[#allocation17 + $0x58] sm:$0xff]
    %v510 = vld [vmem:[#allocation17 + $0x60] sm:$0xff]
    %v511 = vld [vmem:[#allocation17 + $0x68] sm:$0xff]
    %v512 = vld [vmem:[#allocation17 + $0x70] sm:$0xff]
    %v513 = vld [vmem:[#allocation17 + $0x78] sm:$0xff]
    %v514 = vld [vmem:[%s12] sm:$0x1]
    %v516 = vperm.slane %v514, 0
    %518 = vmatpush.msra.mxu0 %v513
    %519 = vmatpush.msra.mxu0 %v512
    %520 = vmatpush.msra.mxu0 %v511
    %521 = vmatpush.msra.mxu0 %v510
    %522 = vmatpush.msra.mxu0 %v509
    %523 = vmatpush.msra.mxu0 %v508
    %524 = vmatpush.msra.mxu0 %v507
    %525 = vmatpush.msra.mxu0 %v506
    %526 = vmatpush.msra.mxu0 %v505
    %527 = vmatpush.msra.mxu0 %v504
    %528 = vmatpush.msra.mxu0 %v503
    %529 = vmatpush.msra.mxu0 %v502
    %530 = vmatpush.msra.mxu0 %v501
    %531 = vmatpush.msra.mxu0 %v500
    %532 = vmatpush.msra.mxu0 %v499
    %533 = vmatpush.msra.mxu0 %v498
    %534 = vmatmul.f32.gmra.mxu0 %v497
    %v535 = vpop.f32.mrf.mxu0
    %v536 = vadd.f32 %v516, %v535
    %537 = vdwg.mxu0
    %v538 = vmul.f32 %v536, 1.442695
    %v539 = vpow.pop %v538
    %v540 = vadd.f32 %v539, 1.0
    %541 = vst [vmem:[#allocation20] sm:$0xff] %v540
    // Predicated region
    $region94: #{tpu_custom_call.1} parent=1 // pred_check
      _
    $region95: #{tpu_custom_call.1} parent=1 // pred_check_branch
      %543 = sbr.rel (0) target = $region97
    $region96: #{tpu_custom_call.1} parent=1 // pred_region
      %545 = vsyncadd [#allocation4], 0
      %s547 = sshll.u32 [#allocation19], 4
      %s548 = int_to_ptr.vmem [resolvable:$true] %s547
      %s549 = sshll.u32 %s13, 4
      %s550 = int_to_ptr.hbm [resolvable:$true] %s549
      %552 = dma.vmem_to_hbm [thread:$0]  %s548, 128, %s550, [#allocation4]
    $region97: #{tpu_custom_call.1} parent=1 // pred_fallthru
      _
    // Predicated region
    $region98: #{tpu_custom_call.1} parent=1 // pred_check
      _
    $region99: #{tpu_custom_call.1} parent=1 // pred_check_branch
      %554 = sbr.rel (0) target = $region101
    $region100: #{tpu_custom_call.1} parent=1 // pred_region
      %556 = vsyncadd [#allocation21], 0
      %s558 = sshll.u32 [#allocation20], 4
      %s559 = int_to_ptr.vmem [resolvable:$true] %s558
      %s560 = sshll.u32 %s14, 4
      %s561 = int_to_ptr.hbm [resolvable:$true] %s560
      %563 = dma.vmem_to_hbm [thread:$0]  %s559, 128, %s561, [#allocation21]
    $region101: #{tpu_custom_call.1} parent=1 // pred_fallthru
      _
    // Predicated region
    $region102: #{tpu_custom_call.1} parent=1 // pred_check
      _
    $region103: #{tpu_custom_call.1} parent=1 // pred_check_branch
      %565 = sbr.rel (0) target = $region105
    $region104: #{tpu_custom_call.1} parent=1 // pred_region
      %567 = dma.done [#allocation4], 128
    $region105: #{tpu_custom_call.1} parent=1 // pred_fallthru
      _
    // Predicated region
    $region106: #{tpu_custom_call.1} parent=1 // pred_check
      _
    $region107: #{tpu_custom_call.1} parent=1 // pred_check_branch
      %569 = sbr.rel (0) target = $region109
    $region108: #{tpu_custom_call.1} parent=1 // pred_region
      %571 = dma.done [#allocation21], 128
    $region109: #{tpu_custom_call.1} parent=1 // pred_fallthru
      _
    %572 = vsyncpa [#allocation3], 1
    %573 = vsyncpa [#allocation6], 1
    %574 = vsyncpa [#allocation9], 1
    %575 = vsyncpa [#allocation12], 1
    %576 = vsyncpa [#allocation15], 1
    %577 = vsyncpa [#allocation18], 1
    %578 = vsyncpa [#allocation4], 1
    %579 = vsyncpa [#allocation21], 1

</llo_original>
